<compile_context>
chip_gen: v7x
topology: tpu7x:2x2x1
jax: 0.10.0
libtpu: 0.0.40
codegen_flags: <defaults>
</compile_context>

<pallas_src>
import functools

import jax
import jax.numpy as jnp
import numpy as np
from jax.experimental import pallas as pl
from jax.experimental.pallas import tpu as pltpu

NEG_SLOPE = 0.01   # nn.LeakyReLU default negative_slope
LANE = 128


def _round_up(x, m):
    return (x + m - 1) // m * m


def _leaky_relu(x):
    return jnp.where(x >= 0, x, NEG_SLOPE * x)


# ---------------------------------------------------------------------------
# fused kernel
# ---------------------------------------------------------------------------
def ob_vae_fwd_kernel(
    in_ref,                                   # [tn, slab_w] packed x | h | eps | pad
    we0_ref, we1_ref, wgru_ref, wheads_ref, wdec_ref, wf_ref,   # resident weights
    b_ref,                                    # [3, 128] packed biases
    out_ref,                                  # [tn, out_w] packed recons|mu|logvar|h|pad
):
    f32 = jnp.float32

    # static sizes (Python ints at trace time)
    d_in = we0_ref.shape[0]
    d_e0 = we0_ref.shape[1]
    d_e1 = we1_ref.shape[1]
    H = wgru_ref.shape[1] // 4
    latent = wheads_ref.shape[1] // 2
    d_dec = wdec_ref.shape[1]
    d_out = wf_ref.shape[1]

    # one lane-dense input DMA, static lane slices
    ins = in_ref[...]
    x = ins[:, 0:d_in]
    h_prev = ins[:, d_in:d_in + H]
    eps = ins[:, d_in + H:d_in + H + latent]

    # one bias load, lane-aligned rows
    b = b_ref[...]
    o = 0
    be0 = b[0:1, o:o + d_e0]; o += d_e0
    be1 = b[0:1, o:o + d_e1]; o += d_e1
    bheads = b[0:1, o:o + 2 * latent]; o += 2 * latent
    bdec = b[0:1, o:o + d_dec]
    bgru = b[1:2, 0:4 * H]
    bf = b[2:3, 0:d_out]

    # encoder: Linear + LeakyReLU stack
    v = _leaky_relu(jnp.dot(x, we0_ref[...], preferred_element_type=f32) + be0)
    v = _leaky_relu(jnp.dot(v, we1_ref[...], preferred_element_type=f32) + be1)

    # GRUCell fused into ONE 128-wide matmul.
    # cols: [ i_r+h_r | i_z+h_z | i_n | h_n ] (PyTorch gate order r, z, n)
    g = jnp.dot(jnp.concatenate([v, h_prev], axis=-1), wgru_ref[...],
                preferred_element_type=f32) + bgru
    r = jax.nn.sigmoid(g[:, 0:H])
    zg = jax.nn.sigmoid(g[:, H:2 * H])
    n = jnp.tanh(g[:, 2 * H:3 * H] + r * g[:, 3 * H:4 * H])
    h = (1.0 - zg) * n + zg * h_prev

    # fc_mu | fc_var fused into one head matmul
    heads = jnp.dot(h, wheads_ref[...], preferred_element_type=f32) + bheads
    mu = heads[:, 0:latent]
    logvar = heads[:, latent:2 * latent]

    # reparameterize: eps * exp(0.5 * logvar) + mu
    z = eps * jnp.exp(0.5 * logvar) + mu

    # decoder: decoder_input (no activation) folded into the first decoder Linear
    d = _leaky_relu(jnp.dot(z, wdec_ref[...], preferred_element_type=f32) + bdec)
    recons = jnp.dot(d, wf_ref[...], preferred_element_type=f32) + bf

    # single lane-dense (128-wide) output store
    parts = [recons, mu, logvar, h]
    pad = out_ref.shape[1] - (d_out + 2 * latent + H)
    if pad > 0:
        parts.append(jnp.zeros((recons.shape[0], pad), f32))
    out_ref[...] = jnp.concatenate(parts, axis=-1)


# ---------------------------------------------------------------------------
# parameter init (deterministic, PyTorch-style uniform(-1/sqrt(fan_in), ...))
# ---------------------------------------------------------------------------
def _init_linear(key, fan_in, fan_out):
    kw, kb = jax.random.split(key)
    bound = 1.0 / np.sqrt(fan_in)
    w = jax.random.uniform(kw, (fan_out, fan_in), jnp.float32, -bound, bound)  # [out, in]
    b = jax.random.uniform(kb, (fan_out,), jnp.float32, -bound, bound)
    return w, b


def _init_gru_cell(key, input_size, hidden_size):
    k1, k2, k3, k4 = jax.random.split(key, 4)
    bound = 1.0 / np.sqrt(hidden_size)
    w_ih = jax.random.uniform(k1, (3 * hidden_size, input_size), jnp.float32, -bound, bound)
    w_hh = jax.random.uniform(k2, (3 * hidden_size, hidden_size), jnp.float32, -bound, bound)
    b_ih = jax.random.uniform(k3, (3 * hidden_size,), jnp.float32, -bound, bound)
    b_hh = jax.random.uniform(k4, (3 * hidden_size,), jnp.float32, -bound, bound)
    return w_ih, w_hh, b_ih, b_hh


def make_params(key, d_in, enc_dims, enc_hidden, latent, dec_dims, d_out):
    keys = jax.random.split(key, 10)
    p = {}
    p["enc0"] = _init_linear(keys[0], d_in, enc_dims[0])
    p["enc1"] = _init_linear(keys[1], enc_dims[0], enc_dims[1])
    p["gru"] = _init_gru_cell(keys[2], enc_dims[1], enc_hidden)
    p["mu"] = _init_linear(keys[3], enc_hidden, latent)
    p["var"] = _init_linear(keys[4], enc_hidden, latent)
    p["dec_in"] = _init_linear(keys[5], latent, dec_dims[0])
    p["dec1"] = _init_linear(keys[6], dec_dims[0], dec_dims[1])
    p["final"] = _init_linear(keys[7], dec_dims[1], d_out)
    return p


# ---------------------------------------------------------------------------
# one-time weight packing into the fused kernel layout (outside the hot path)
# ---------------------------------------------------------------------------
def pack_params(params):
    f32 = jnp.float32
    hi = jax.lax.Precision.HIGHEST

    def wt(w):  # PyTorch [out, in] -> kernel [in, out]
        return jnp.transpose(w).astype(f32)

    we0, be0 = wt(params["enc0"][0]), params["enc0"][1].astype(f32)
    we1, be1 = wt(params["enc1"][0]), params["enc1"][1].astype(f32)

    # GRUCell: block weight [E+H, 4H]; rows 0..E-1 from v, rows E.. from h_prev.
    # cols = [wih_r | wih_z | wih_n | 0] over v and [whh_r | whh_z | 0 | whh_n] over h.
    w_ih, w_hh, b_ih, b_hh = params["gru"]
    wih, whh = wt(w_ih), wt(w_hh)            # [E, 3H], [H, 3H]
    E = wih.shape[0]
    H = whh.shape[0]
    wgru = jnp.concatenate([
        jnp.concatenate([wih[:, 0:H], wih[:, H:2 * H], wih[:, 2 * H:3 * H],
                         jnp.zeros((E, H), f32)], axis=1),
        jnp.concatenate([whh[:, 0:H], whh[:, H:2 * H], jnp.zeros((H, H), f32),
                         whh[:, 2 * H:3 * H]], axis=1),
    ], axis=0)                               # [E+H, 4H]
    bgru = jnp.concatenate([
        b_ih[0:H] + b_hh[0:H],
        b_ih[H:2 * H] + b_hh[H:2 * H],
        b_ih[2 * H:3 * H],
        b_hh[2 * H:3 * H],
    ]).astype(f32)                           # [4H]

    # fc_mu | fc_var fused
    wheads = jnp.concatenate([wt(params["mu"][0]), wt(params["var"][0])], axis=1)
    bheads = jnp.concatenate([params["mu"][1], params["var"][1]]).astype(f32)

    # fold decoder_input (no activation) into the first decoder Linear (exact: Linear∘Linear)
    wdi, bdi = wt(params["dec_in"][0]), params["dec_in"][1].astype(f32)
    wd1, bd1 = wt(params["dec1"][0]), params["dec1"][1].astype(f32)
    wdec = jnp.dot(wdi, wd1, precision=hi, preferred_element_type=f32)      # [latent, dec1]
    bdec = jnp.dot(bdi[None, :], wd1, precision=hi, preferred_element_type=f32)[0] + bd1

    wf, bf = wt(params["final"][0]), params["final"][1].astype(f32)

    # lane-aligned bias pack: row0 = be0|be1|bheads|bdec, row1 = fused GRU bias, row2 = bf
    row0 = jnp.concatenate([be0, be1, bheads, bdec])
    bias_w = _round_up(int(max(row0.shape[0], bgru.shape[0], bf.shape[0])), LANE)

    def pad_row(v):
        return jnp.pad(v, (0, bias_w - v.shape[0]))

    b_pack = jnp.stack([pad_row(row0), pad_row(bgru), pad_row(bf)]).astype(f32)

    return {"we0": we0, "we1": we1, "wgru": wgru, "wheads": wheads,
            "wdec": wdec, "wf": wf, "b": b_pack}


def _pick_tile(n, tile_n):
    """Batch tile: multiple of 8 that divides N, >=2 grid steps when possible (v7x 2-TC)."""
    tn = max(8, min(tile_n, n))
    if tn == n and n % 16 == 0:
        tn = n // 2
    tn -= tn % 8
    while tn > 8 and n % tn != 0:
        tn -= 8
    if tn < 8 or n % tn != 0:
        tn = n                     # fallback: single full-batch tile (block == full array)
    return tn


# ---------------------------------------------------------------------------
# hot-path forward (jit'ed): pack activations, one pallas_call over a batch grid
# ---------------------------------------------------------------------------
@functools.partial(jax.jit, static_argnames=("tile_n",))
def ob_vae_forward(x, encoder_hidden_state, eps, packed, tile_n=2048):
    """Mirrors ObVAEEnc.forward: returns (recons, input, mu, log_var, h)."""
    f32 = jnp.float32
    we0, we1 = packed["we0"], packed["we1"]
    wgru, wheads = packed["wgru"], packed["wheads"]
    wdec, wf, b_pack = packed["wdec"], packed["wf"], packed["b"]

    d_in = we0.shape[0]
    H = wgru.shape[1] // 4
    latent = wheads.shape[1] // 2
    d_out = wf.shape[1]

    x = x.astype(f32)
    h_in = encoder_hidden_state.reshape(-1, H).astype(f32)
    eps = eps.astype(f32)
    N = x.shape[0]

    slab_w = _round_up(d_in + H + latent, LANE)          # lane-dense input slab
    out_w = _round_up(d_out + 2 * latent + H, LANE)      # lane-dense output slab

    in_parts = [x, h_in, eps]
    pad = slab_w - (d_in + H + latent)
    if pad > 0:
        in_parts.append(jnp.zeros((N, pad), f32))
    in_slab = jnp.concatenate(in_parts, axis=-1)

    tn = _pick_tile(N, tile_n)
    grid = (N // tn,)

    def batch_spec(width):
        # Optionally: pipeline_mode=pl.Buffered(3) if profiling shows exposed input DMA.
        return pl.BlockSpec((tn, width), lambda i: (i, 0))

    def resident(arr):  # same block every grid step -> stays in VMEM, no re-DMA
        return pl.BlockSpec(arr.shape, lambda i: (0, 0))

    weights = (we0, we1, wgru, wheads, wdec, wf)
    in_specs = [batch_spec(slab_w)] + [resident(w) for w in weights] + [resident(b_pack)]

    # ~8 KB/row covers double-buffered I/O + intermediates; floor 16 MiB (raises v5e's
    # scoped default), cap 48 MiB (safe on v7x's 64 MiB/TC).
    vmem_limit = int(min(48 << 20, max(16 << 20, 8 * 1024 * tn)))

    out = pl.pallas_call(
        ob_vae_fwd_kernel,
        out_shape=jax.ShapeDtypeStruct((N, out_w), f32),
        grid=grid,
        in_specs=in_specs,
        out_specs=batch_spec(out_w),
        compiler_params=pltpu.CompilerParams(
            dimension_semantics=("parallel",),
            vmem_limit_bytes=vmem_limit,
        ),
    )(in_slab, *weights, b_pack)

    recons = out[:, 0:d_out]
    mu = out[:, d_out:d_out + latent]
    logvar = out[:, d_out + latent:d_out + 2 * latent]
    h = out[:, d_out + 2 * latent:d_out + 2 * latent + H]
    return recons, x, mu, logvar, h


# ---------------------------------------------------------------------------
# pure-JAX reference (unfused, PyTorch layout, HIGHEST-precision matmuls)
# ---------------------------------------------------------------------------
def ob_vae_reference(x, h_state, eps, params, enc_hidden):
    hi = jax.lax.Precision.HIGHEST

    def lin(v, wb):
        w, b = wb
        return jnp.dot(v, w.T, precision=hi) + b

    def lrelu(v):
        return jnp.where(v >= 0, v, NEG_SLOPE * v)

    H = enc_hidden
    h_in = h_state.reshape(-1, H)
    v = lrelu(lin(x, params["enc0"]))
    v = lrelu(lin(v, params["enc1"]))
    w_ih, w_hh, b_ih, b_hh = params["gru"]
    gi = jnp.dot(v, w_ih.T, precision=hi) + b_ih
    gh = jnp.dot(h_in, w_hh.T, precision=hi) + b_hh
    i_r, i_z, i_n = gi[:, :H], gi[:, H:2 * H], gi[:, 2 * H:]
    h_r, h_z, h_n = gh[:, :H], gh[:, H:2 * H], gh[:, 2 * H:]
    r = jax.nn.sigmoid(i_r + h_r)
    zg = jax.nn.sigmoid(i_z + h_z)
    n = jnp.tanh(i_n + r * h_n)
    h = (1.0 - zg) * n + zg * h_in
    mu = lin(h, params["mu"])
    logvar = lin(h, params["var"])
    z = eps * jnp.exp(0.5 * logvar) + mu
    d = lin(z, params["dec_in"])
    d = lrelu(lin(d, params["dec1"]))
    recons = lin(d, params["final"])
    return recons, x, mu, logvar, h


if __name__ == "__main__":
    # small shapes consistent with the module; batch tiled to exercise a >=2-step grid
    N, D_IN, D_OUT = 256, 16, 16
    ENC_DIMS = [32, 32]
    ENC_HIDDEN = 32
    LATENT = 16
    DEC_DIMS = [32, 32]
    TILE_N = 64   # -> grid of 4 batch tiles here; at production batch sizes use 1024-4096

    key = jax.random.PRNGKey(0)
    kx, kh, keps, kp = jax.random.split(key, 4)
    x = jax.random.normal(kx, (N, D_IN), jnp.float32)
    h_state = jax.random.normal(kh, (N, ENC_HIDDEN), jnp.float32)
    # torch.randn_like(std) has no deterministic in-kernel equivalent matching torch;
    # eps is drawn host-side with jax.random and passed into the kernel.
    eps = jax.random.normal(keps, (N, LATENT), jnp.float32)

    params = make_params(kp, D_IN, ENC_DIMS, ENC_HIDDEN, LATENT, DEC_DIMS, D_OUT)
    packed = pack_params(params)   # one-time weight fusion/packing, outside the hot path

    outs = ob_vae_forward(x, h_state, eps, packed, tile_n=TILE_N)
    outs = jax.block_until_ready(outs)

    refs = ob_vae_reference(x, h_state, eps, params, ENC_HIDDEN)
    # Tolerance covers MXU f32 pass-decomposition differences between the Pallas matmuls
    # and the HIGHEST-precision XLA reference; any wiring/fusion bug would be O(0.1-1).
    for got, want in zip(outs, refs):
        np.testing.assert_allclose(np.asarray(got), np.asarray(want), rtol=2e-3, atol=2e-3)

    print("KERNEL_OK")
</pallas_src>

<mosaic_0001>
module attributes {stable_mosaic.version = 11 : i64} {
  func.func @ob_vae_fwd_kernel(%arg0: i32, %arg1: memref<64x128xf32, #tpu.memory_space<vmem>>, %arg2: memref<16x32xf32, #tpu.memory_space<vmem>>, %arg3: memref<32x32xf32, #tpu.memory_space<vmem>>, %arg4: memref<64x128xf32, #tpu.memory_space<vmem>>, %arg5: memref<32x32xf32, #tpu.memory_space<vmem>>, %arg6: memref<16x32xf32, #tpu.memory_space<vmem>>, %arg7: memref<32x16xf32, #tpu.memory_space<vmem>>, %arg8: memref<3x128xf32, #tpu.memory_space<vmem>>, %arg9: memref<64x128xf32, #tpu.memory_space<vmem>>) attributes {dimension_semantics = [#tpu.dimension_semantics<parallel>], iteration_bounds = array<i64: 4>, scalar_prefetch = 0 : i64, scratch_operands = 0 : i64, tpu.core_type = #tpu.core_type<tc>, window_params = [{transform_indices = @transform_0, window_bounds = array<i64: 64, 128>}, {pipeline_mode = #tpu.pipeline_mode<synchronous>, transform_indices = @transform_1, window_bounds = array<i64: 16, 32>}, {pipeline_mode = #tpu.pipeline_mode<synchronous>, transform_indices = @transform_2, window_bounds = array<i64: 32, 32>}, {pipeline_mode = #tpu.pipeline_mode<synchronous>, transform_indices = @transform_3, window_bounds = array<i64: 64, 128>}, {pipeline_mode = #tpu.pipeline_mode<synchronous>, transform_indices = @transform_4, window_bounds = array<i64: 32, 32>}, {pipeline_mode = #tpu.pipeline_mode<synchronous>, transform_indices = @transform_5, window_bounds = array<i64: 16, 32>}, {pipeline_mode = #tpu.pipeline_mode<synchronous>, transform_indices = @transform_6, window_bounds = array<i64: 32, 16>}, {pipeline_mode = #tpu.pipeline_mode<synchronous>, transform_indices = @transform_7, window_bounds = array<i64: 3, 128>}, {transform_indices = @transform_8, window_bounds = array<i64: 64, 128>}]} {
    %c0 = arith.constant 0 : index
    %c0_0 = arith.constant 0 : index
    %0 = vector.load %arg1[%c0, %c0_0] : memref<64x128xf32, #tpu.memory_space<vmem>>, vector<64x128xf32>
    %1 = vector.extract_strided_slice %0 {offsets = [0, 0], sizes = [64, 16], strides = [1, 1]} : vector<64x128xf32> to vector<64x16xf32>
    %2 = vector.extract_strided_slice %0 {offsets = [0, 16], sizes = [64, 32], strides = [1, 1]} : vector<64x128xf32> to vector<64x32xf32>
    %3 = vector.extract_strided_slice %0 {offsets = [0, 48], sizes = [64, 16], strides = [1, 1]} : vector<64x128xf32> to vector<64x16xf32>
    %c0_1 = arith.constant 0 : index
    %c0_2 = arith.constant 0 : index
    %4 = vector.load %arg8[%c0_1, %c0_2] : memref<3x128xf32, #tpu.memory_space<vmem>>, vector<3x128xf32>
    %5 = vector.extract_strided_slice %4 {offsets = [0, 0], sizes = [1, 32], strides = [1, 1]} : vector<3x128xf32> to vector<1x32xf32>
    %6 = vector.extract_strided_slice %4 {offsets = [0, 32], sizes = [1, 32], strides = [1, 1]} : vector<3x128xf32> to vector<1x32xf32>
    %7 = vector.extract_strided_slice %4 {offsets = [0, 64], sizes = [1, 32], strides = [1, 1]} : vector<3x128xf32> to vector<1x32xf32>
    %8 = vector.extract_strided_slice %4 {offsets = [0, 96], sizes = [1, 32], strides = [1, 1]} : vector<3x128xf32> to vector<1x32xf32>
    %9 = vector.extract_strided_slice %4 {offsets = [1, 0], sizes = [1, 128], strides = [1, 1]} : vector<3x128xf32> to vector<1x128xf32>
    %10 = vector.extract_strided_slice %4 {offsets = [2, 0], sizes = [1, 16], strides = [1, 1]} : vector<3x128xf32> to vector<1x16xf32>
    %c0_3 = arith.constant 0 : index
    %c0_4 = arith.constant 0 : index
    %11 = vector.load %arg2[%c0_3, %c0_4] : memref<16x32xf32, #tpu.memory_space<vmem>>, vector<16x32xf32>
    %cst = arith.constant dense<0.000000e+00> : vector<64x32xf32>
    %12 = tpu.matmul %1, %11, %cst {dimension_numbers = #tpu.dot_dimension_numbers<[1], [0], [0], [1], [0, 0, 1, 1], [], []>} : vector<64x16xf32>, vector<16x32xf32>, vector<64x32xf32> -> vector<64x32xf32>
    %13 = vector.broadcast %5 : vector<1x32xf32> to vector<64x32xf32>
    %14 = arith.addf %12, %13 : vector<64x32xf32>
    %cst_5 = arith.constant 0.000000e+00 : f32
    %15 = vector.broadcast %cst_5 : f32 to vector<64x32xf32>
    %16 = arith.cmpf oge, %14, %15 : vector<64x32xf32>
    %cst_6 = arith.constant 0.00999999977 : f32
    %17 = vector.broadcast %cst_6 : f32 to vector<64x32xf32>
    %18 = arith.mulf %17, %14 : vector<64x32xf32>
    %19 = arith.select %16, %14, %18 : vector<64x32xi1>, vector<64x32xf32>
    %c0_7 = arith.constant 0 : index
    %c0_8 = arith.constant 0 : index
    %20 = vector.load %arg3[%c0_7, %c0_8] : memref<32x32xf32, #tpu.memory_space<vmem>>, vector<32x32xf32>
    %cst_9 = arith.constant dense<0.000000e+00> : vector<64x32xf32>
    %21 = tpu.matmul %19, %20, %cst_9 {dimension_numbers = #tpu.dot_dimension_numbers<[1], [0], [0], [1], [0, 0, 1, 1], [], []>} : vector<64x32xf32>, vector<32x32xf32>, vector<64x32xf32> -> vector<64x32xf32>
    %22 = vector.broadcast %6 : vector<1x32xf32> to vector<64x32xf32>
    %23 = arith.addf %21, %22 : vector<64x32xf32>
    %cst_10 = arith.constant 0.000000e+00 : f32
    %24 = vector.broadcast %cst_10 : f32 to vector<64x32xf32>
    %25 = arith.cmpf oge, %23, %24 : vector<64x32xf32>
    %cst_11 = arith.constant 0.00999999977 : f32
    %26 = vector.broadcast %cst_11 : f32 to vector<64x32xf32>
    %27 = arith.mulf %26, %23 : vector<64x32xf32>
    %28 = arith.select %25, %23, %27 : vector<64x32xi1>, vector<64x32xf32>
    %29 = tpu.concatenate %28, %2 in 1 : vector<64x32xf32>, vector<64x32xf32> -> vector<64x64xf32>
    %c0_12 = arith.constant 0 : index
    %c0_13 = arith.constant 0 : index
    %30 = vector.load %arg4[%c0_12, %c0_13] : memref<64x128xf32, #tpu.memory_space<vmem>>, vector<64x128xf32>
    %cst_14 = arith.constant dense<0.000000e+00> : vector<64x128xf32>
    %31 = tpu.matmul %29, %30, %cst_14 {dimension_numbers = #tpu.dot_dimension_numbers<[1], [0], [0], [1], [0, 0, 1, 1], [], []>} : vector<64x64xf32>, vector<64x128xf32>, vector<64x128xf32> -> vector<64x128xf32>
    %32 = vector.broadcast %9 : vector<1x128xf32> to vector<64x128xf32>
    %33 = arith.addf %31, %32 : vector<64x128xf32>
    %34 = vector.extract_strided_slice %33 {offsets = [0, 0], sizes = [64, 32], strides = [1, 1]} : vector<64x128xf32> to vector<64x32xf32>
    %35 = arith.negf %34 : vector<64x32xf32>
    %36 = math.exp %35 : vector<64x32xf32>
    %cst_15 = arith.constant 1.000000e+00 : f32
    %37 = vector.broadcast %cst_15 : f32 to vector<64x32xf32>
    %38 = arith.addf %37, %36 : vector<64x32xf32>
    %39 = arith.divf %37, %38 : vector<64x32xf32>
    %40 = vector.extract_strided_slice %33 {offsets = [0, 32], sizes = [64, 32], strides = [1, 1]} : vector<64x128xf32> to vector<64x32xf32>
    %41 = arith.negf %40 : vector<64x32xf32>
    %42 = math.exp %41 : vector<64x32xf32>
    %cst_16 = arith.constant 1.000000e+00 : f32
    %43 = vector.broadcast %cst_16 : f32 to vector<64x32xf32>
    %44 = arith.addf %43, %42 : vector<64x32xf32>
    %45 = arith.divf %43, %44 : vector<64x32xf32>
    %46 = vector.extract_strided_slice %33 {offsets = [0, 64], sizes = [64, 32], strides = [1, 1]} : vector<64x128xf32> to vector<64x32xf32>
    %47 = vector.extract_strided_slice %33 {offsets = [0, 96], sizes = [64, 32], strides = [1, 1]} : vector<64x128xf32> to vector<64x32xf32>
    %48 = arith.mulf %39, %47 : vector<64x32xf32>
    %49 = arith.addf %46, %48 : vector<64x32xf32>
    %50 = math.tanh %49 : vector<64x32xf32>
    %cst_17 = arith.constant 1.000000e+00 : f32
    %51 = vector.broadcast %cst_17 : f32 to vector<64x32xf32>
    %52 = arith.subf %51, %45 : vector<64x32xf32>
    %53 = arith.mulf %52, %50 : vector<64x32xf32>
    %54 = arith.mulf %45, %2 : vector<64x32xf32>
    %55 = arith.addf %53, %54 : vector<64x32xf32>
    %c0_18 = arith.constant 0 : index
    %c0_19 = arith.constant 0 : index
    %56 = vector.load %arg5[%c0_18, %c0_19] : memref<32x32xf32, #tpu.memory_space<vmem>>, vector<32x32xf32>
    %cst_20 = arith.constant dense<0.000000e+00> : vector<64x32xf32>
    %57 = tpu.matmul %55, %56, %cst_20 {dimension_numbers = #tpu.dot_dimension_numbers<[1], [0], [0], [1], [0, 0, 1, 1], [], []>} : vector<64x32xf32>, vector<32x32xf32>, vector<64x32xf32> -> vector<64x32xf32>
    %58 = vector.broadcast %7 : vector<1x32xf32> to vector<64x32xf32>
    %59 = arith.addf %57, %58 : vector<64x32xf32>
    %60 = vector.extract_strided_slice %59 {offsets = [0, 0], sizes = [64, 16], strides = [1, 1]} : vector<64x32xf32> to vector<64x16xf32>
    %61 = vector.extract_strided_slice %59 {offsets = [0, 16], sizes = [64, 16], strides = [1, 1]} : vector<64x32xf32> to vector<64x16xf32>
    %cst_21 = arith.constant 5.000000e-01 : f32
    %62 = vector.broadcast %cst_21 : f32 to vector<64x16xf32>
    %63 = arith.mulf %62, %61 : vector<64x16xf32>
    %64 = math.exp %63 : vector<64x16xf32>
    %65 = arith.mulf %3, %64 : vector<64x16xf32>
    %66 = arith.addf %65, %60 : vector<64x16xf32>
    %c0_22 = arith.constant 0 : index
    %c0_23 = arith.constant 0 : index
    %67 = vector.load %arg6[%c0_22, %c0_23] : memref<16x32xf32, #tpu.memory_space<vmem>>, vector<16x32xf32>
    %cst_24 = arith.constant dense<0.000000e+00> : vector<64x32xf32>
    %68 = tpu.matmul %66, %67, %cst_24 {dimension_numbers = #tpu.dot_dimension_numbers<[1], [0], [0], [1], [0, 0, 1, 1], [], []>} : vector<64x16xf32>, vector<16x32xf32>, vector<64x32xf32> -> vector<64x32xf32>
    %69 = vector.broadcast %8 : vector<1x32xf32> to vector<64x32xf32>
    %70 = arith.addf %68, %69 : vector<64x32xf32>
    %cst_25 = arith.constant 0.000000e+00 : f32
    %71 = vector.broadcast %cst_25 : f32 to vector<64x32xf32>
    %72 = arith.cmpf oge, %70, %71 : vector<64x32xf32>
    %cst_26 = arith.constant 0.00999999977 : f32
    %73 = vector.broadcast %cst_26 : f32 to vector<64x32xf32>
    %74 = arith.mulf %73, %70 : vector<64x32xf32>
    %75 = arith.select %72, %70, %74 : vector<64x32xi1>, vector<64x32xf32>
    %c0_27 = arith.constant 0 : index
    %c0_28 = arith.constant 0 : index
    %76 = vector.load %arg7[%c0_27, %c0_28] : memref<32x16xf32, #tpu.memory_space<vmem>>, vector<32x16xf32>
    %cst_29 = arith.constant dense<0.000000e+00> : vector<64x16xf32>
    %77 = tpu.matmul %75, %76, %cst_29 {dimension_numbers = #tpu.dot_dimension_numbers<[1], [0], [0], [1], [0, 0, 1, 1], [], []>} : vector<64x32xf32>, vector<32x16xf32>, vector<64x16xf32> -> vector<64x16xf32>
    %78 = vector.broadcast %10 : vector<1x16xf32> to vector<64x16xf32>
    %79 = arith.addf %77, %78 : vector<64x16xf32>
    %cst_30 = arith.constant 0.000000e+00 : f32
    %80 = vector.broadcast %cst_30 : f32 to vector<64x48xf32>
    %81 = tpu.concatenate %79, %60, %61, %55, %80 in 1 : vector<64x16xf32>, vector<64x16xf32>, vector<64x16xf32>, vector<64x32xf32>, vector<64x48xf32> -> vector<64x128xf32>
    %c0_31 = arith.constant 0 : index
    %c0_32 = arith.constant 0 : index
    %82 = vector.load %arg9[%c0_31, %c0_32] : memref<64x128xf32, #tpu.memory_space<vmem>>, vector<64x128xf32>
    tpu.vector_store %arg9[%c0_31, %c0_32], %81 {strides = array<i32>} : memref<64x128xf32, #tpu.memory_space<vmem>>, vector<64x128xf32>,
    return
  }
  func.func @transform_0(%arg0: i32) -> (i32, i32) {
    %c0_i32 = arith.constant 0 : i32
    %c0_i32_0 = arith.constant 0 : i32
    return %arg0, %c0_i32 : i32, i32
  }
  func.func @transform_1(%arg0: i32) -> (i32, i32) {
    %c0_i32 = arith.constant 0 : i32
    %c0_i32_0 = arith.constant 0 : i32
    %c0_i32_1 = arith.constant 0 : i32
    return %c0_i32, %c0_i32_0 : i32, i32
  }
  func.func @transform_2(%arg0: i32) -> (i32, i32) {
    %c0_i32 = arith.constant 0 : i32
    %c0_i32_0 = arith.constant 0 : i32
    %c0_i32_1 = arith.constant 0 : i32
    return %c0_i32, %c0_i32_0 : i32, i32
  }
  func.func @transform_3(%arg0: i32) -> (i32, i32) {
    %c0_i32 = arith.constant 0 : i32
    %c0_i32_0 = arith.constant 0 : i32
    %c0_i32_1 = arith.constant 0 : i32
    return %c0_i32, %c0_i32_0 : i32, i32
  }
  func.func @transform_4(%arg0: i32) -> (i32, i32) {
    %c0_i32 = arith.constant 0 : i32
    %c0_i32_0 = arith.constant 0 : i32
    %c0_i32_1 = arith.constant 0 : i32
    return %c0_i32, %c0_i32_0 : i32, i32
  }
  func.func @transform_5(%arg0: i32) -> (i32, i32) {
    %c0_i32 = arith.constant 0 : i32
    %c0_i32_0 = arith.constant 0 : i32
    %c0_i32_1 = arith.constant 0 : i32
    return %c0_i32, %c0_i32_0 : i32, i32
  }
  func.func @transform_6(%arg0: i32) -> (i32, i32) {
    %c0_i32 = arith.constant 0 : i32
    %c0_i32_0 = arith.constant 0 : i32
    %c0_i32_1 = arith.constant 0 : i32
    return %c0_i32, %c0_i32_0 : i32, i32
  }
  func.func @transform_7(%arg0: i32) -> (i32, i32) {
    %c0_i32 = arith.constant 0 : i32
    %c0_i32_0 = arith.constant 0 : i32
    %c0_i32_1 = arith.constant 0 : i32
    return %c0_i32, %c0_i32_0 : i32, i32
  }
  func.func @transform_8(%arg0: i32) -> (i32, i32) {
    %c0_i32 = arith.constant 0 : i32
    %c0_i32_0 = arith.constant 0 : i32
    return %arg0, %c0_i32 : i32, i32
  }
}

</mosaic_0001>

<llo_original>
// kernel: ob_vae_forward.1
$region0: #{ob_vae_forward.1}
  #allocation0 [shape = 'u32[]', space=smem, size = 0x4, offset = 0x4, fixed_abs, tag = 'smem constant byte address 0x4 - core index']
  #allocation1 [shape = 'u32[144,128]{1,0:T(1,128)}', space=vmem, size = 0x12000, scoped, tag = 'internal scratch']
  %s0 = inlined_call_operand.vmem [shape: f32[256,128], index: 0, kind: input, shape index: {}]
  %s1 = inlined_call_operand.vmem [shape: f32[16,32], index: 1, kind: input, shape index: {}]
  %s2 = inlined_call_operand.vmem [shape: f32[32,32], index: 2, kind: input, shape index: {}]
  %s3 = inlined_call_operand.vmem [shape: f32[64,128], index: 3, kind: input, shape index: {}]
  %s4 = inlined_call_operand.vmem [shape: f32[32,32], index: 4, kind: input, shape index: {}]
  %s5 = inlined_call_operand.vmem [shape: f32[16,32], index: 5, kind: input, shape index: {}]
  %s6 = inlined_call_operand.vmem [shape: f32[32,16], index: 6, kind: input, shape index: {}]
  %s7 = inlined_call_operand.vmem [shape: f32[3,128], index: 7, kind: input, shape index: {}]
  %s8 = inlined_call_operand.vmem [shape: f32[256,128], index: 8, kind: output, shape index: {}]
  %s9 = sld [smem:[#allocation0]]
  $region65: #{ob_vae_forward.1} parent=0
    _
  %s11 = ssub.s32 1, %s9
  %s12 = scalar_select 0, %s11, %s9
  loop: start=0, step=1, limit=6
  $region2: #{ob_vae_forward.1} parent=0 // loop_pre_header
    _
  $region3: #{ob_vae_forward.1} parent=0 // loop_header
    %s14 = sphi 0, %s18
    %p15 = scmp.ge.s32.totalorder %s14, 6
    %s24 = sphi 0, %s26
    %s27 = sphi 0, %s24
    %s28 = sphi 0, %s27
    %s44 = sphi 0, %s28
    %s48 = sphi 0, %s48
    %s50 = sphi 0, %s48
    %s51 = sphi 0, %s50
    %s65 = sphi 0, %s51
    %s69 = sphi 0, %s69
    %s71 = sphi 0, %s69
    %s72 = sphi 0, %s71
    %s86 = sphi 0, %s72
    %s90 = sphi 0, %s90
    %s92 = sphi 0, %s90
    %s93 = sphi 0, %s92
    %s107 = sphi 0, %s93
    %s111 = sphi 0, %s111
    %s113 = sphi 0, %s111
    %s114 = sphi 0, %s113
    %s128 = sphi 0, %s114
    %s132 = sphi 0, %s132
    %s134 = sphi 0, %s132
    %s135 = sphi 0, %s134
    %s149 = sphi 0, %s135
    %s153 = sphi 0, %s153
    %s155 = sphi 0, %s153
    %s156 = sphi 0, %s155
    %s170 = sphi 0, %s156
    %s174 = sphi 0, %s174
    %s176 = sphi 0, %s174
    %s177 = sphi 0, %s176
    %s191 = sphi 0, %s177
    %s197 = sphi 0, %s199
    %s200 = sphi 0, %s197
    %s201 = sphi 0, %s200
    %s217 = sphi 0, %s201
  $region4: #{ob_vae_forward.1} parent=0 // loop_header_branch
    %17 = sbr.rel (%p15) target = $region8
  $region5: #{ob_vae_forward.1} parent=0 // loop_body
    %s19 = ssub.s32 %s14, 1
    %s20 = ssub.s32 %s14, 2
    %s21 = sadd.s32 %s14, 1
    %s22 = ssub.s32 %s14, %s21
    %p23 = scmp.eq.s32.totalorder %s22, 0
    %s25 = sadd.s32 %s24, 1
    %s26 = scalar_select %p23, %s24, %s25
    %p29 = pneg %p23
    %p30 = scmp.eq.s32.totalorder %s14, 3
    %p31 = por %p29, %p30
    %p32 = scmp.ne.s32.totalorder %s24, %s27
    %p33 = scmp.eq.s32.totalorder %s14, 0
    %p34 = por %p32, %p33
    %p35 = scmp.ne.s32.totalorder %s24, %s27
    %p36 = scmp.eq.s32.totalorder %s19, 3
    %p37 = por %p35, %p36
    %p38 = scmp.ne.s32.totalorder %s27, %s28
    %p39 = scmp.eq.s32.totalorder %s19, 0
    %p40 = por %p38, %p39
    %p41 = scmp.ne.s32.totalorder %s27, %s28
    %p42 = scmp.eq.s32.totalorder %s20, 3
    %p43 = por %p41, %p42
    %p45 = scmp.ne.s32.totalorder %s28, %s44
    %p46 = scmp.eq.s32.totalorder %s20, 0
    %p47 = por %p45, %p46
    %s49 = sadd.s32 %s48, 1
    %p52 = scmp.eq.s32.totalorder %s14, 3
    %p53 = scmp.ne.s32.totalorder %s48, %s50
    %p54 = scmp.eq.s32.totalorder %s14, 0
    %p55 = por %p53, %p54
    %p56 = scmp.ne.s32.totalorder %s48, %s50
    %p57 = scmp.eq.s32.totalorder %s19, 3
    %p58 = por %p56, %p57
    %p59 = scmp.ne.s32.totalorder %s50, %s51
    %p60 = scmp.eq.s32.totalorder %s19, 0
    %p61 = por %p59, %p60
    %p62 = scmp.ne.s32.totalorder %s50, %s51
    %p63 = scmp.eq.s32.totalorder %s20, 3
    %p64 = por %p62, %p63
    %p66 = scmp.ne.s32.totalorder %s51, %s65
    %p67 = scmp.eq.s32.totalorder %s20, 0
    %p68 = por %p66, %p67
    %s70 = sadd.s32 %s69, 1
    %p73 = scmp.eq.s32.totalorder %s14, 3
    %p74 = scmp.ne.s32.totalorder %s69, %s71
    %p75 = scmp.eq.s32.totalorder %s14, 0
    %p76 = por %p74, %p75
    %p77 = scmp.ne.s32.totalorder %s69, %s71
    %p78 = scmp.eq.s32.totalorder %s19, 3
    %p79 = por %p77, %p78
    %p80 = scmp.ne.s32.totalorder %s71, %s72
    %p81 = scmp.eq.s32.totalorder %s19, 0
    %p82 = por %p80, %p81
    %p83 = scmp.ne.s32.totalorder %s71, %s72
    %p84 = scmp.eq.s32.totalorder %s20, 3
    %p85 = por %p83, %p84
    %p87 = scmp.ne.s32.totalorder %s72, %s86
    %p88 = scmp.eq.s32.totalorder %s20, 0
    %p89 = por %p87, %p88
    %s91 = sadd.s32 %s90, 1
    %p94 = scmp.eq.s32.totalorder %s14, 3
    %p95 = scmp.ne.s32.totalorder %s90, %s92
    %p96 = scmp.eq.s32.totalorder %s14, 0
    %p97 = por %p95, %p96
    %p98 = scmp.ne.s32.totalorder %s90, %s92
    %p99 = scmp.eq.s32.totalorder %s19, 3
    %p100 = por %p98, %p99
    %p101 = scmp.ne.s32.totalorder %s92, %s93
    %p102 = scmp.eq.s32.totalorder %s19, 0
    %p103 = por %p101, %p102
    %p104 = scmp.ne.s32.totalorder %s92, %s93
    %p105 = scmp.eq.s32.totalorder %s20, 3
    %p106 = por %p104, %p105
    %p108 = scmp.ne.s32.totalorder %s93, %s107
    %p109 = scmp.eq.s32.totalorder %s20, 0
    %p110 = por %p108, %p109
    %s112 = sadd.s32 %s111, 1
    %p115 = scmp.eq.s32.totalorder %s14, 3
    %p116 = scmp.ne.s32.totalorder %s111, %s113
    %p117 = scmp.eq.s32.totalorder %s14, 0
    %p118 = por %p116, %p117
    %p119 = scmp.ne.s32.totalorder %s111, %s113
    %p120 = scmp.eq.s32.totalorder %s19, 3
    %p121 = por %p119, %p120
    %p122 = scmp.ne.s32.totalorder %s113, %s114
    %p123 = scmp.eq.s32.totalorder %s19, 0
    %p124 = por %p122, %p123
    %p125 = scmp.ne.s32.totalorder %s113, %s114
    %p126 = scmp.eq.s32.totalorder %s20, 3
    %p127 = por %p125, %p126
    %p129 = scmp.ne.s32.totalorder %s114, %s128
    %p130 = scmp.eq.s32.totalorder %s20, 0
    %p131 = por %p129, %p130
    %s133 = sadd.s32 %s132, 1
    %p136 = scmp.eq.s32.totalorder %s14, 3
    %p137 = scmp.ne.s32.totalorder %s132, %s134
    %p138 = scmp.eq.s32.totalorder %s14, 0
    %p139 = por %p137, %p138
    %p140 = scmp.ne.s32.totalorder %s132, %s134
    %p141 = scmp.eq.s32.totalorder %s19, 3
    %p142 = por %p140, %p141
    %p143 = scmp.ne.s32.totalorder %s134, %s135
    %p144 = scmp.eq.s32.totalorder %s19, 0
    %p145 = por %p143, %p144
    %p146 = scmp.ne.s32.totalorder %s134, %s135
    %p147 = scmp.eq.s32.totalorder %s20, 3
    %p148 = por %p146, %p147
    %p150 = scmp.ne.s32.totalorder %s135, %s149
    %p151 = scmp.eq.s32.totalorder %s20, 0
    %p152 = por %p150, %p151
    %s154 = sadd.s32 %s153, 1
    %p157 = scmp.eq.s32.totalorder %s14, 3
    %p158 = scmp.ne.s32.totalorder %s153, %s155
    %p159 = scmp.eq.s32.totalorder %s14, 0
    %p160 = por %p158, %p159
    %p161 = scmp.ne.s32.totalorder %s153, %s155
    %p162 = scmp.eq.s32.totalorder %s19, 3
    %p163 = por %p161, %p162
    %p164 = scmp.ne.s32.totalorder %s155, %s156
    %p165 = scmp.eq.s32.totalorder %s19, 0
    %p166 = por %p164, %p165
    %p167 = scmp.ne.s32.totalorder %s155, %s156
    %p168 = scmp.eq.s32.totalorder %s20, 3
    %p169 = por %p167, %p168
    %p171 = scmp.ne.s32.totalorder %s156, %s170
    %p172 = scmp.eq.s32.totalorder %s20, 0
    %p173 = por %p171, %p172
    %s175 = sadd.s32 %s174, 1
    %p178 = scmp.eq.s32.totalorder %s14, 3
    %p179 = scmp.ne.s32.totalorder %s174, %s176
    %p180 = scmp.eq.s32.totalorder %s14, 0
    %p181 = por %p179, %p180
    %p182 = scmp.ne.s32.totalorder %s174, %s176
    %p183 = scmp.eq.s32.totalorder %s19, 3
    %p184 = por %p182, %p183
    %p185 = scmp.ne.s32.totalorder %s176, %s177
    %p186 = scmp.eq.s32.totalorder %s19, 0
    %p187 = por %p185, %p186
    %p188 = scmp.ne.s32.totalorder %s176, %s177
    %p189 = scmp.eq.s32.totalorder %s20, 3
    %p190 = por %p188, %p189
    %p192 = scmp.ne.s32.totalorder %s177, %s191
    %p193 = scmp.eq.s32.totalorder %s20, 0
    %p194 = por %p192, %p193
    %s195 = ssub.s32 %s14, %s21
    %p196 = scmp.eq.s32.totalorder %s195, 0
    %s198 = sadd.s32 %s197, 1
    %s199 = scalar_select %p196, %s197, %s198
    %p202 = pneg %p196
    %p203 = scmp.eq.s32.totalorder %s14, 3
    %p204 = por %p202, %p203
    %p205 = scmp.ne.s32.totalorder %s197, %s200
    %p206 = scmp.eq.s32.totalorder %s14, 0
    %p207 = por %p205, %p206
    %p208 = scmp.ne.s32.totalorder %s197, %s200
    %p209 = scmp.eq.s32.totalorder %s19, 3
    %p210 = por %p208, %p209
    %p211 = scmp.ne.s32.totalorder %s200, %s201
    %p212 = scmp.eq.s32.totalorder %s19, 0
    %p213 = por %p211, %p212
    %p214 = scmp.ne.s32.totalorder %s200, %s201
    %p215 = scmp.eq.s32.totalorder %s20, 3
    %p216 = por %p214, %p215
    %p218 = scmp.ne.s32.totalorder %s201, %s217
    %p219 = scmp.eq.s32.totalorder %s20, 0
    %p220 = por %p218, %p219
    %p221 = scmp.le.s32.totalorder 1, %s14
    %p222 = scmp.lt.s32.totalorder %s14, 5
    %p223 = pnand %p221, %p222
    %p224 = pneg %p223
    // Predicated region
    $region9: #{ob_vae_forward.1} parent=5 // pred_check
      _
    $region10: #{ob_vae_forward.1} parent=5 // pred_check_branch
      %226 = sbr.rel (%p223) target = $region12
    $region11: #{ob_vae_forward.1} parent=5 // pred_region
      %s227 = ssub.s32 %s14, 1
      // Predicated region
      $region13: #{ob_vae_forward.1} parent=11 // pred_check
        %p228 = pneg %p61
      $region14: #{ob_vae_forward.1} parent=11 // pred_check_branch
        %230 = sbr.rel (%p228) target = $region16
      $region15: #{ob_vae_forward.1} parent=11 // pred_region
        _
      $region16: #{ob_vae_forward.1} parent=11 // pred_fallthru
        _
      // Predicated region
      $region17: #{ob_vae_forward.1} parent=11 // pred_check
        %p231 = pneg %p82
      $region18: #{ob_vae_forward.1} parent=11 // pred_check_branch
        %233 = sbr.rel (%p231) target = $region20
      $region19: #{ob_vae_forward.1} parent=11 // pred_region
        _
      $region20: #{ob_vae_forward.1} parent=11 // pred_fallthru
        _
      // Predicated region
      $region21: #{ob_vae_forward.1} parent=11 // pred_check
        %p234 = pneg %p103
      $region22: #{ob_vae_forward.1} parent=11 // pred_check_branch
        %236 = sbr.rel (%p234) target = $region24
      $region23: #{ob_vae_forward.1} parent=11 // pred_region
        _
      $region24: #{ob_vae_forward.1} parent=11 // pred_fallthru
        _
      // Predicated region
      $region25: #{ob_vae_forward.1} parent=11 // pred_check
        %p237 = pneg %p124
      $region26: #{ob_vae_forward.1} parent=11 // pred_check_branch
        %239 = sbr.rel (%p237) target = $region28
      $region27: #{ob_vae_forward.1} parent=11 // pred_region
        _
      $region28: #{ob_vae_forward.1} parent=11 // pred_fallthru
        _
      // Predicated region
      $region29: #{ob_vae_forward.1} parent=11 // pred_check
        %p240 = pneg %p145
      $region30: #{ob_vae_forward.1} parent=11 // pred_check_branch
        %242 = sbr.rel (%p240) target = $region32
      $region31: #{ob_vae_forward.1} parent=11 // pred_region
        _
      $region32: #{ob_vae_forward.1} parent=11 // pred_fallthru
        _
      // Predicated region
      $region33: #{ob_vae_forward.1} parent=11 // pred_check
        %p243 = pneg %p166
      $region34: #{ob_vae_forward.1} parent=11 // pred_check_branch
        %245 = sbr.rel (%p243) target = $region36
      $region35: #{ob_vae_forward.1} parent=11 // pred_region
        _
      $region36: #{ob_vae_forward.1} parent=11 // pred_fallthru
        _
      // Predicated region
      $region37: #{ob_vae_forward.1} parent=11 // pred_check
        %p246 = pneg %p187
      $region38: #{ob_vae_forward.1} parent=11 // pred_check_branch
        %248 = sbr.rel (%p246) target = $region40
      $region39: #{ob_vae_forward.1} parent=11 // pred_region
        _
      $region40: #{ob_vae_forward.1} parent=11 // pred_fallthru
        _
    $region12: #{ob_vae_forward.1} parent=5 // pred_fallthru
      _
    %p249 = scmp.lt.s32.totalorder %s14, 4
    // Predicated region
    $region41: #{ob_vae_forward.1} parent=5 // pred_check
      %p250 = pneg %p249
    $region42: #{ob_vae_forward.1} parent=5 // pred_check_branch
      %252 = sbr.rel (%p250) target = $region44
    $region43: #{ob_vae_forward.1} parent=5 // pred_region
      // Predicated region
      $region45: #{ob_vae_forward.1} parent=43 // pred_check
        %p253 = pneg %p34
      $region46: #{ob_vae_forward.1} parent=43 // pred_check_branch
        %255 = sbr.rel (%p253) target = $region48
      $region47: #{ob_vae_forward.1} parent=43 // pred_region
        %s256 = smul.u32 8, %s14
        %p257 = scmp.lt.s32.totalorder %s256, 31
        %s258 = scalar_select %p257, %s256, 31
        %s259 = smul.addr %s258, 8
        %s260 = scalar_lea.vmem %s0, %s259
        %s261 = smul.u32 8, %s14
      $region48: #{ob_vae_forward.1} parent=43 // pred_fallthru
        _
    $region44: #{ob_vae_forward.1} parent=5 // pred_fallthru
      _
    %p262 = scmp.le.s32.totalorder 1, %s14
    %p263 = scmp.lt.s32.totalorder %s14, 5
    %p264 = pnand %p262, %p263
    %p265 = pneg %p264
    // Predicated region
    $region49: #{ob_vae_forward.1} parent=5 // pred_check
      _
    $region50: #{ob_vae_forward.1} parent=5 // pred_check_branch
      %267 = sbr.rel (%p264) target = $region52
    $region51: #{ob_vae_forward.1} parent=5 // pred_region
      %s268 = ssub.s32 %s14, 1
      %s269 = smul.u32 8, %s19
      %p270 = scmp.lt.s32.totalorder %s269, 31
      %s271 = scalar_select %p270, %s269, 31
      %s272 = smul.addr %s271, 8
      %s273 = scalar_lea.vmem %s0, %s272
      %p274 = pneg %p40
      %p275 = pneg %p37
      %p276 = pneg %p61
      %p277 = pneg %p58
      %p278 = pneg %p82
      %p279 = pneg %p79
      %p280 = pneg %p103
      %p281 = pneg %p100
      %p282 = pneg %p124
      %p283 = pneg %p121
      %p284 = pneg %p145
      %p285 = pneg %p142
      %p286 = pneg %p166
      %p287 = pneg %p163
      %p288 = pneg %p187
      %p289 = pneg %p184
      %p290 = pneg %p213
      %p291 = pneg %p210
      %s292 = smul.u32 8, %s19
      %p293 = scmp.lt.s32.totalorder %s292, 31
      %s294 = scalar_select %p293, %s292, 31
      %s295 = smul.addr %s294, 8
      %s296 = scalar_lea.vmem %s8, %s295
      %s297 = smul.u32 8, %s19
      %p298 = scmp.lt.s32.totalorder %s297, 31
      %s299 = scalar_select %p298, %s297, 31
      %s300 = smul.addr %s299, 8
      %s301 = scalar_lea.vmem %s0, %s300
      %s302 = smul.u32 8, %s19
      %s303 = smul.u32 8, %s19
      %p304 = scmp.lt.s32.totalorder %s303, 31
      %s305 = scalar_select %p304, %s303, 31
      %s306 = smul.addr %s305, 8
      %s307 = scalar_lea.vmem %s8, %s306
      %s308 = smul.u32 8, %s19
      %v309 = vld [vmem:[%s301] sm:$0xff]
      %v310 = vld [vmem:[%s301 + $0x8] sm:$0xff]
      %v311 = vld [vmem:[%s301 + $0x10] sm:$0xff]
      %v312 = vld [vmem:[%s301 + $0x18] sm:$0xff]
      %v313 = vld [vmem:[%s301 + $0x20] sm:$0xff]
      %v314 = vld [vmem:[%s301 + $0x28] sm:$0xff]
      %v315 = vld [vmem:[%s301 + $0x30] sm:$0xff]
      %v316 = vld [vmem:[%s301 + $0x38] sm:$0xff]
      %v317 = vld [vmem:[%s7] sm:$0x7]
      %v318 = vld [vmem:[%s1] sm:$0xff]
      %v319 = vld [vmem:[%s1 + $0x8] sm:$0xff]
      %v320 = vlaneseq
      %v321 = vshrl.u32 %v320, 7
      %v322 = vsub.s32 0, %v321
      %v323 = vrot.slane %v317, %v322
      %vm324 = vcmask 130048
      %v326 = vsel %vm324, %v309, 0
      %v329 = vsel %vm324, %v310, 0
      %v332 = vsel %vm324, %v311, 0
      %v335 = vsel %vm324, %v312, 0
      %v338 = vsel %vm324, %v313, 0
      %v341 = vsel %vm324, %v314, 0
      %v344 = vsel %vm324, %v315, 0
      %v347 = vsel %vm324, %v316, 0
      %349 = vmatprep.subr.mxu0 0.0
      %350 = vmatpush1.msra.mxu0 %v318
      %351 = vmatprep.subr.mxu0 0.0
      %352 = vmatpush1.msra.mxu0 %v319
      %353 = vmatprep.subr.mxu0 0.0
      %354 = vmatpush1.msra.mxu0 0.0
      %355 = vmatprep.subr.mxu0 0.0
      %356 = vmatpush1.msra.mxu0 0.0
      %357 = vmatprep.subr.mxu0 0.0
      %358 = vmatpush1.msra.mxu0 0.0
      %359 = vmatprep.subr.mxu0 0.0
      %360 = vmatpush1.msra.mxu0 0.0
      %361 = vmatprep.subr.mxu0 0.0
      %362 = vmatpush1.msra.mxu0 0.0
      %363 = vmatprep.subr.mxu0 0.0
      %364 = vmatpush1.msra.mxu0 0.0
      %365 = vmatprep.subr.mxu0 0.0
      %366 = vmatpush1.msra.mxu0 0.0
      %367 = vmatprep.subr.mxu0 0.0
      %368 = vmatpush1.msra.mxu0 0.0
      %369 = vmatprep.subr.mxu0 0.0
      %370 = vmatpush1.msra.mxu0 0.0
      %371 = vmatprep.subr.mxu0 0.0
      %372 = vmatpush1.msra.mxu0 0.0
      %373 = vmatprep.subr.mxu0 0.0
      %374 = vmatpush1.msra.mxu0 0.0
      %375 = vmatprep.subr.mxu0 0.0
      %376 = vmatpush1.msra.mxu0 0.0
      %377 = vmatprep.subr.mxu0 0.0
      %378 = vmatpush1.msra.mxu0 0.0
      %379 = vmatprep.subr.mxu0 0.0
      %380 = vmatpush1.msra.mxu0 0.0
      %381 = vmatprep.subr.mxu0 0.0
      %382 = vmatpush1.msra.mxu0 0.0
      %383 = vmatprep.subr.mxu0 0.0
      %384 = vmatpush1.msra.mxu0 0.0
      %385 = vmatprep.subr.mxu0 0.0
      %386 = vmatpush1.msra.mxu0 0.0
      %387 = vmatprep.subr.mxu0 0.0
      %388 = vmatpush1.msra.mxu0 0.0
      %389 = vmatprep.subr.mxu0 0.0
      %390 = vmatpush1.msra.mxu0 0.0
      %391 = vmatprep.subr.mxu0 0.0
      %392 = vmatpush1.msra.mxu0 0.0
      %393 = vmatprep.subr.mxu0 0.0
      %394 = vmatpush1.msra.mxu0 0.0
      %395 = vmatprep.subr.mxu0 0.0
      %396 = vmatpush1.msra.mxu0 0.0
      %397 = vmatprep.subr.mxu0 0.0
      %398 = vmatpush1.msra.mxu0 0.0
      %399 = vmatprep.subr.mxu0 0.0
      %400 = vmatpush1.msra.mxu0 0.0
      %401 = vmatprep.subr.mxu0 0.0
      %402 = vmatpush1.msra.mxu0 0.0
      %403 = vmatprep.subr.mxu0 0.0
      %404 = vmatpush1.msra.mxu0 0.0
      %405 = vmatprep.subr.mxu0 0.0
      %406 = vmatpush1.msra.mxu0 0.0
      %407 = vmatprep.subr.mxu0 0.0
      %408 = vmatpush1.msra.mxu0 0.0
      %409 = vmatprep.subr.mxu0 0.0
      %410 = vmatpush1.msra.mxu0 0.0
      %411 = vmatprep.subr.mxu0 0.0
      %412 = vmatpush1.msra.mxu0 0.0
      %413 = vmatprep.mubr.f32.mxu0 0.0
      %414 = vmatmul.mubr.f32.gmra.mrb[0].mxu0 %v326
      %v415 = vpop.f32.mrb[0].mxu0
      %v416 = vadd.f32 %v323, %v415
      %v417 = vpop.f32.mrb[0].mxu0
      %418 = vmatprep.mubr.f32.mxu0 0.0
      %419 = vmatmul.mubr.f32.gmra.mrb[0].mxu0 %v329
      %v420 = vpop.f32.mrb[0].mxu0
      %v421 = vadd.f32 %v323, %v420
      %v422 = vpop.f32.mrb[0].mxu0
      %423 = vmatprep.mubr.f32.mxu0 0.0
      %424 = vmatmul.mubr.f32.gmra.mrb[0].mxu0 %v332
      %v425 = vpop.f32.mrb[0].mxu0
      %v426 = vadd.f32 %v323, %v425
      %v427 = vpop.f32.mrb[0].mxu0
      %428 = vmatprep.mubr.f32.mxu0 0.0
      %429 = vmatmul.mubr.f32.gmra.mrb[0].mxu0 %v335
      %v430 = vpop.f32.mrb[0].mxu0
      %v431 = vadd.f32 %v323, %v430
      %v432 = vpop.f32.mrb[0].mxu0
      %433 = vmatprep.mubr.f32.mxu0 0.0
      %434 = vmatmul.mubr.f32.gmra.mrb[0].mxu0 %v338
      %v435 = vpop.f32.mrb[0].mxu0
      %v436 = vadd.f32 %v323, %v435
      %v437 = vpop.f32.mrb[0].mxu0
      %438 = vmatprep.mubr.f32.mxu0 0.0
      %439 = vmatmul.mubr.f32.gmra.mrb[0].mxu0 %v341
      %v440 = vpop.f32.mrb[0].mxu0
      %v441 = vadd.f32 %v323, %v440
      %v442 = vpop.f32.mrb[0].mxu0
      %443 = vmatprep.mubr.f32.mxu0 0.0
      %444 = vmatmul.mubr.f32.gmra.mrb[0].mxu0 %v344
      %v445 = vpop.f32.mrb[0].mxu0
      %v446 = vadd.f32 %v323, %v445
      %v447 = vpop.f32.mrb[0].mxu0
      %448 = vmatprep.mubr.f32.mxu0 0.0
      %449 = vmatmul.mubr.f32.gmra.mrb[0].mxu0 %v347
      %v450 = vpop.f32.mrb[0].mxu0
      %v451 = vadd.f32 %v323, %v450
      %v452 = vpop.f32.mrb[0].mxu0
      %453 = vdwg.mxu0
      %vm454 = vcmp.ge.f32.partialorder %v416, 0.0
      %vm455 = vcmp.ge.f32.partialorder %v421, 0.0
      %vm456 = vcmp.ge.f32.partialorder %v426, 0.0
      %vm457 = vcmp.ge.f32.partialorder %v431, 0.0
      %vm458 = vcmp.ge.f32.partialorder %v436, 0.0
      %vm459 = vcmp.ge.f32.partialorder %v441, 0.0
      %vm460 = vcmp.ge.f32.partialorder %v446, 0.0
      %vm461 = vcmp.ge.f32.partialorder %v451, 0.0
      %v462 = vmul.f32 %v416, 0.01
      %v463 = vmul.f32 %v421, 0.01
      %v464 = vmul.f32 %v426, 0.01
      %v465 = vmul.f32 %v431, 0.01
      %v466 = vmul.f32 %v436, 0.01
      %v467 = vmul.f32 %v441, 0.01
      %v468 = vmul.f32 %v446, 0.01
      %v469 = vmul.f32 %v451, 0.01
      %v470 = vsel %vm454, %v416, %v462
      %v471 = vsel %vm455, %v421, %v463
      %v472 = vsel %vm456, %v426, %v464
      %v473 = vsel %vm457, %v431, %v465
      %v474 = vsel %vm458, %v436, %v466
      %v475 = vsel %vm459, %v441, %v467
      %v476 = vsel %vm460, %v446, %v468
      %v477 = vsel %vm461, %v451, %v469
      %v478 = vld [vmem:[%s2] sm:$0xff]
      %v479 = vld [vmem:[%s2 + $0x8] sm:$0xff]
      %v480 = vld [vmem:[%s2 + $0x10] sm:$0xff]
      %v481 = vld [vmem:[%s2 + $0x18] sm:$0xff]
      %483 = vrot.lane.b32.xlu0 %v323, 96
      %v484 = vpop.permute.xlu0 %483
      %vm486 = vcmask 261120
      %v488 = vsel %vm486, %v470, 0
      %v491 = vsel %vm486, %v471, 0
      %v494 = vsel %vm486, %v472, 0
      %v497 = vsel %vm486, %v473, 0
      %v500 = vsel %vm486, %v474, 0
      %v503 = vsel %vm486, %v475, 0
      %v506 = vsel %vm486, %v476, 0
      %v509 = vsel %vm486, %v477, 0
      %511 = vmatprep.subr.mxu0 0.0
      %512 = vmatpush1.msra.mxu0 %v478
      %513 = vmatprep.subr.mxu0 0.0
      %514 = vmatpush1.msra.mxu0 %v479
      %515 = vmatprep.subr.mxu0 0.0
      %516 = vmatpush1.msra.mxu0 %v480
      %517 = vmatprep.subr.mxu0 0.0
      %518 = vmatpush1.msra.mxu0 %v481
      %519 = vmatprep.subr.mxu0 0.0
      %520 = vmatpush1.msra.mxu0 0.0
      %521 = vmatprep.subr.mxu0 0.0
      %522 = vmatpush1.msra.mxu0 0.0
      %523 = vmatprep.subr.mxu0 0.0
      %524 = vmatpush1.msra.mxu0 0.0
      %525 = vmatprep.subr.mxu0 0.0
      %526 = vmatpush1.msra.mxu0 0.0
      %527 = vmatprep.subr.mxu0 0.0
      %528 = vmatpush1.msra.mxu0 0.0
      %529 = vmatprep.subr.mxu0 0.0
      %530 = vmatpush1.msra.mxu0 0.0
      %531 = vmatprep.subr.mxu0 0.0
      %532 = vmatpush1.msra.mxu0 0.0
      %533 = vmatprep.subr.mxu0 0.0
      %534 = vmatpush1.msra.mxu0 0.0
      %535 = vmatprep.subr.mxu0 0.0
      %536 = vmatpush1.msra.mxu0 0.0
      %537 = vmatprep.subr.mxu0 0.0
      %538 = vmatpush1.msra.mxu0 0.0
      %539 = vmatprep.subr.mxu0 0.0
      %540 = vmatpush1.msra.mxu0 0.0
      %541 = vmatprep.subr.mxu0 0.0
      %542 = vmatpush1.msra.mxu0 0.0
      %543 = vmatprep.subr.mxu0 0.0
      %544 = vmatpush1.msra.mxu0 0.0
      %545 = vmatprep.subr.mxu0 0.0
      %546 = vmatpush1.msra.mxu0 0.0
      %547 = vmatprep.subr.mxu0 0.0
      %548 = vmatpush1.msra.mxu0 0.0
      %549 = vmatprep.subr.mxu0 0.0
      %550 = vmatpush1.msra.mxu0 0.0
      %551 = vmatprep.subr.mxu0 0.0
      %552 = vmatpush1.msra.mxu0 0.0
      %553 = vmatprep.subr.mxu0 0.0
      %554 = vmatpush1.msra.mxu0 0.0
      %555 = vmatprep.subr.mxu0 0.0
      %556 = vmatpush1.msra.mxu0 0.0
      %557 = vmatprep.subr.mxu0 0.0
      %558 = vmatpush1.msra.mxu0 0.0
      %559 = vmatprep.subr.mxu0 0.0
      %560 = vmatpush1.msra.mxu0 0.0
      %561 = vmatprep.subr.mxu0 0.0
      %562 = vmatpush1.msra.mxu0 0.0
      %563 = vmatprep.subr.mxu0 0.0
      %564 = vmatpush1.msra.mxu0 0.0
      %565 = vmatprep.subr.mxu0 0.0
      %566 = vmatpush1.msra.mxu0 0.0
      %567 = vmatprep.subr.mxu0 0.0
      %568 = vmatpush1.msra.mxu0 0.0
      %569 = vmatprep.subr.mxu0 0.0
      %570 = vmatpush1.msra.mxu0 0.0
      %571 = vmatprep.subr.mxu0 0.0
      %572 = vmatpush1.msra.mxu0 0.0
      %573 = vmatprep.subr.mxu0 0.0
      %574 = vmatpush1.msra.mxu0 0.0
      %575 = vmatprep.mubr.f32.mxu0 0.0
      %576 = vmatmul.mubr.f32.gmra.mrb[0].mxu0 %v488
      %v577 = vpop.f32.mrb[0].mxu0
      %v578 = vadd.f32 %v484, %v577
      %v579 = vpop.f32.mrb[0].mxu0
      %580 = vmatprep.mubr.f32.mxu0 0.0
      %581 = vmatmul.mubr.f32.gmra.mrb[0].mxu0 %v491
      %v582 = vpop.f32.mrb[0].mxu0
      %v583 = vadd.f32 %v484, %v582
      %v584 = vpop.f32.mrb[0].mxu0
      %585 = vmatprep.mubr.f32.mxu0 0.0
      %586 = vmatmul.mubr.f32.gmra.mrb[0].mxu0 %v494
      %v587 = vpop.f32.mrb[0].mxu0
      %v588 = vadd.f32 %v484, %v587
      %v589 = vpop.f32.mrb[0].mxu0
      %590 = vmatprep.mubr.f32.mxu0 0.0
      %591 = vmatmul.mubr.f32.gmra.mrb[0].mxu0 %v497
      %v592 = vpop.f32.mrb[0].mxu0
      %v593 = vadd.f32 %v484, %v592
      %v594 = vpop.f32.mrb[0].mxu0
      %595 = vmatprep.mubr.f32.mxu0 0.0
      %596 = vmatmul.mubr.f32.gmra.mrb[0].mxu0 %v500
      %v597 = vpop.f32.mrb[0].mxu0
      %v598 = vadd.f32 %v484, %v597
      %v599 = vpop.f32.mrb[0].mxu0
      %600 = vmatprep.mubr.f32.mxu0 0.0
      %601 = vmatmul.mubr.f32.gmra.mrb[0].mxu0 %v503
      %v602 = vpop.f32.mrb[0].mxu0
      %v603 = vadd.f32 %v484, %v602
      %v604 = vpop.f32.mrb[0].mxu0
      %605 = vmatprep.mubr.f32.mxu0 0.0
      %606 = vmatmul.mubr.f32.gmra.mrb[0].mxu0 %v506
      %v607 = vpop.f32.mrb[0].mxu0
      %v608 = vadd.f32 %v484, %v607
      %v609 = vpop.f32.mrb[0].mxu0
      %610 = vmatprep.mubr.f32.mxu0 0.0
      %611 = vmatmul.mubr.f32.gmra.mrb[0].mxu0 %v509
      %v612 = vpop.f32.mrb[0].mxu0
      %v613 = vadd.f32 %v484, %v612
      %v614 = vpop.f32.mrb[0].mxu0
      %615 = vdwg.mxu0
      %vm616 = vcmp.ge.f32.partialorder %v578, 0.0
      %vm617 = vcmp.ge.f32.partialorder %v583, 0.0
      %vm618 = vcmp.ge.f32.partialorder %v588, 0.0
      %vm619 = vcmp.ge.f32.partialorder %v593, 0.0
      %vm620 = vcmp.ge.f32.partialorder %v598, 0.0
      %vm621 = vcmp.ge.f32.partialorder %v603, 0.0
      %vm622 = vcmp.ge.f32.partialorder %v608, 0.0
      %vm623 = vcmp.ge.f32.partialorder %v613, 0.0
      %v624 = vmul.f32 %v578, 0.01
      %v625 = vmul.f32 %v583, 0.01
      %v626 = vmul.f32 %v588, 0.01
      %v627 = vmul.f32 %v593, 0.01
      %v628 = vmul.f32 %v598, 0.01
      %v629 = vmul.f32 %v603, 0.01
      %v630 = vmul.f32 %v608, 0.01
      %v631 = vmul.f32 %v613, 0.01
      %v632 = vsel %vm616, %v578, %v624
      %v633 = vsel %vm617, %v583, %v625
      %v634 = vsel %vm618, %v588, %v626
      %v635 = vsel %vm619, %v593, %v627
      %v636 = vsel %vm620, %v598, %v628
      %v637 = vsel %vm621, %v603, %v629
      %v638 = vsel %vm622, %v608, %v630
      %v639 = vsel %vm623, %v613, %v631
      %640 = vrot.lane.b32.xlu0 %v309, 16
      %v641 = vpop.permute.xlu0 %640
      %642 = vrot.lane.b32.xlu0 %v310, 16
      %v643 = vpop.permute.xlu0 %642
      %644 = vrot.lane.b32.xlu0 %v311, 16
      %v645 = vpop.permute.xlu0 %644
      %646 = vrot.lane.b32.xlu0 %v312, 16
      %v647 = vpop.permute.xlu0 %646
      %648 = vrot.lane.b32.xlu0 %v313, 16
      %v649 = vpop.permute.xlu0 %648
      %650 = vrot.lane.b32.xlu0 %v314, 16
      %v651 = vpop.permute.xlu0 %650
      %652 = vrot.lane.b32.xlu0 %v315, 16
      %v653 = vpop.permute.xlu0 %652
      %654 = vrot.lane.b32.xlu0 %v316, 16
      %v655 = vpop.permute.xlu0 %654
      %v664 = vsel %vm486, %v632, %v641
      %v665 = vsel %vm486, %v633, %v643
      %v666 = vsel %vm486, %v634, %v645
      %v667 = vsel %vm486, %v635, %v647
      %v668 = vsel %vm486, %v636, %v649
      %v669 = vsel %vm486, %v637, %v651
      %v670 = vsel %vm486, %v638, %v653
      %v671 = vsel %vm486, %v639, %v655
      %v672 = vld [vmem:[%s3] sm:$0xff]
      %v673 = vld [vmem:[%s3 + $0x8] sm:$0xff]
      %v674 = vld [vmem:[%s3 + $0x10] sm:$0xff]
      %v675 = vld [vmem:[%s3 + $0x18] sm:$0xff]
      %v676 = vld [vmem:[%s3 + $0x20] sm:$0xff]
      %v677 = vld [vmem:[%s3 + $0x28] sm:$0xff]
      %v678 = vld [vmem:[%s3 + $0x30] sm:$0xff]
      %v679 = vld [vmem:[%s3 + $0x38] sm:$0xff]
      %v680 = vlaneseq
      %v681 = vshrl.u32 %v680, 7
      %v682 = vsub.s32 1, %v681
      %v683 = vrot.slane %v317, %v682
      %vm684 = vcmask 523264
      %v686 = vsel %vm684, %v664, 0
      %v689 = vsel %vm684, %v665, 0
      %v692 = vsel %vm684, %v666, 0
      %v695 = vsel %vm684, %v667, 0
      %v698 = vsel %vm684, %v668, 0
      %v701 = vsel %vm684, %v669, 0
      %v704 = vsel %vm684, %v670, 0
      %v707 = vsel %vm684, %v671, 0
      %709 = vmatprep.subr.mxu0 0.0
      %710 = vmatpush1.msra.mxu0 %v672
      %711 = vmatprep.subr.mxu0 0.0
      %712 = vmatpush1.msra.mxu0 %v673
      %713 = vmatprep.subr.mxu0 0.0
      %714 = vmatpush1.msra.mxu0 %v674
      %715 = vmatprep.subr.mxu0 0.0
      %716 = vmatpush1.msra.mxu0 %v675
      %717 = vmatprep.subr.mxu0 0.0
      %718 = vmatpush1.msra.mxu0 %v676
      %719 = vmatprep.subr.mxu0 0.0
      %720 = vmatpush1.msra.mxu0 %v677
      %721 = vmatprep.subr.mxu0 0.0
      %722 = vmatpush1.msra.mxu0 %v678
      %723 = vmatprep.subr.mxu0 0.0
      %724 = vmatpush1.msra.mxu0 %v679
      %725 = vmatprep.subr.mxu0 0.0
      %726 = vmatpush1.msra.mxu0 0.0
      %727 = vmatprep.subr.mxu0 0.0
      %728 = vmatpush1.msra.mxu0 0.0
      %729 = vmatprep.subr.mxu0 0.0
      %730 = vmatpush1.msra.mxu0 0.0
      %731 = vmatprep.subr.mxu0 0.0
      %732 = vmatpush1.msra.mxu0 0.0
      %733 = vmatprep.subr.mxu0 0.0
      %734 = vmatpush1.msra.mxu0 0.0
      %735 = vmatprep.subr.mxu0 0.0
      %736 = vmatpush1.msra.mxu0 0.0
      %737 = vmatprep.subr.mxu0 0.0
      %738 = vmatpush1.msra.mxu0 0.0
      %739 = vmatprep.subr.mxu0 0.0
      %740 = vmatpush1.msra.mxu0 0.0
      %741 = vmatprep.subr.mxu0 0.0
      %742 = vmatpush1.msra.mxu0 0.0
      %743 = vmatprep.subr.mxu0 0.0
      %744 = vmatpush1.msra.mxu0 0.0
      %745 = vmatprep.subr.mxu0 0.0
      %746 = vmatpush1.msra.mxu0 0.0
      %747 = vmatprep.subr.mxu0 0.0
      %748 = vmatpush1.msra.mxu0 0.0
      %749 = vmatprep.subr.mxu0 0.0
      %750 = vmatpush1.msra.mxu0 0.0
      %751 = vmatprep.subr.mxu0 0.0
      %752 = vmatpush1.msra.mxu0 0.0
      %753 = vmatprep.subr.mxu0 0.0
      %754 = vmatpush1.msra.mxu0 0.0
      %755 = vmatprep.subr.mxu0 0.0
      %756 = vmatpush1.msra.mxu0 0.0
      %757 = vmatprep.subr.mxu0 0.0
      %758 = vmatpush1.msra.mxu0 0.0
      %759 = vmatprep.subr.mxu0 0.0
      %760 = vmatpush1.msra.mxu0 0.0
      %761 = vmatprep.subr.mxu0 0.0
      %762 = vmatpush1.msra.mxu0 0.0
      %763 = vmatprep.subr.mxu0 0.0
      %764 = vmatpush1.msra.mxu0 0.0
      %765 = vmatprep.subr.mxu0 0.0
      %766 = vmatpush1.msra.mxu0 0.0
      %767 = vmatprep.subr.mxu0 0.0
      %768 = vmatpush1.msra.mxu0 0.0
      %769 = vmatprep.subr.mxu0 0.0
      %770 = vmatpush1.msra.mxu0 0.0
      %771 = vmatprep.subr.mxu0 0.0
      %772 = vmatpush1.msra.mxu0 0.0
      %773 = vmatprep.mubr.f32.mxu0 0.0
      %774 = vmatmul.mubr.f32.gmra.mrb[0].mxu0 %v686
      %v775 = vpop.f32.mrb[0].mxu0
      %v776 = vadd.f32 %v683, %v775
      %v777 = vpop.f32.mrb[0].mxu0
      %778 = vmatprep.mubr.f32.mxu0 0.0
      %779 = vmatmul.mubr.f32.gmra.mrb[0].mxu0 %v689
      %v780 = vpop.f32.mrb[0].mxu0
      %v781 = vadd.f32 %v683, %v780
      %v782 = vpop.f32.mrb[0].mxu0
      %783 = vmatprep.mubr.f32.mxu0 0.0
      %784 = vmatmul.mubr.f32.gmra.mrb[0].mxu0 %v692
      %v785 = vpop.f32.mrb[0].mxu0
      %v786 = vadd.f32 %v683, %v785
      %v787 = vpop.f32.mrb[0].mxu0
      %788 = vmatprep.mubr.f32.mxu0 0.0
      %789 = vmatmul.mubr.f32.gmra.mrb[0].mxu0 %v695
      %v790 = vpop.f32.mrb[0].mxu0
      %v791 = vadd.f32 %v683, %v790
      %v792 = vpop.f32.mrb[0].mxu0
      %793 = vmatprep.mubr.f32.mxu0 0.0
      %794 = vmatmul.mubr.f32.gmra.mrb[0].mxu0 %v698
      %v795 = vpop.f32.mrb[0].mxu0
      %v796 = vadd.f32 %v683, %v795
      %v797 = vpop.f32.mrb[0].mxu0
      %798 = vmatprep.mubr.f32.mxu0 0.0
      %799 = vmatmul.mubr.f32.gmra.mrb[0].mxu0 %v701
      %v800 = vpop.f32.mrb[0].mxu0
      %v801 = vadd.f32 %v683, %v800
      %v802 = vpop.f32.mrb[0].mxu0
      %803 = vmatprep.mubr.f32.mxu0 0.0
      %804 = vmatmul.mubr.f32.gmra.mrb[0].mxu0 %v704
      %v805 = vpop.f32.mrb[0].mxu0
      %v806 = vadd.f32 %v683, %v805
      %v807 = vpop.f32.mrb[0].mxu0
      %808 = vmatprep.mubr.f32.mxu0 0.0
      %809 = vmatmul.mubr.f32.gmra.mrb[0].mxu0 %v707
      %v810 = vpop.f32.mrb[0].mxu0
      %v811 = vadd.f32 %v683, %v810
      %v812 = vpop.f32.mrb[0].mxu0
      %813 = vdwg.mxu0
      %v814 = vxor.u32 %v776, 2147483648
      %v815 = vxor.u32 %v781, 2147483648
      %v816 = vxor.u32 %v786, 2147483648
      %v817 = vxor.u32 %v791, 2147483648
      %v818 = vxor.u32 %v796, 2147483648
      %v819 = vxor.u32 %v801, 2147483648
      %v820 = vxor.u32 %v806, 2147483648
      %v821 = vxor.u32 %v811, 2147483648
      %v822 = vmul.f32 %v814, 1.442695
      %v823 = vpow.pop %v822
      %v824 = vmul.f32 %v815, 1.442695
      %v825 = vpow.pop %v824
      %v826 = vmul.f32 %v816, 1.442695
      %v827 = vpow.pop %v826
      %v828 = vmul.f32 %v817, 1.442695
      %v829 = vpow.pop %v828
      %v830 = vmul.f32 %v818, 1.442695
      %v831 = vpow.pop %v830
      %v832 = vmul.f32 %v819, 1.442695
      %v833 = vpow.pop %v832
      %v834 = vmul.f32 %v820, 1.442695
      %v835 = vpow.pop %v834
      %v836 = vmul.f32 %v821, 1.442695
      %v837 = vpow.pop %v836
      %v838 = vadd.f32 %v823, 1.0
      %v839 = vadd.f32 %v825, 1.0
      %v840 = vadd.f32 %v827, 1.0
      %v841 = vadd.f32 %v829, 1.0
      %v842 = vadd.f32 %v831, 1.0
      %v843 = vadd.f32 %v833, 1.0
      %v844 = vadd.f32 %v835, 1.0
      %v845 = vadd.f32 %v837, 1.0
      %v846 = vrcp.pop %v838
      %v847 = vmul.f32 1.0, %v846
      %v848 = vrcp.pop %v839
      %v849 = vmul.f32 1.0, %v848
      %v850 = vrcp.pop %v840
      %v851 = vmul.f32 1.0, %v850
      %v852 = vrcp.pop %v841
      %v853 = vmul.f32 1.0, %v852
      %v854 = vrcp.pop %v842
      %v855 = vmul.f32 1.0, %v854
      %v856 = vrcp.pop %v843
      %v857 = vmul.f32 1.0, %v856
      %v858 = vrcp.pop %v844
      %v859 = vmul.f32 1.0, %v858
      %v860 = vrcp.pop %v845
      %v861 = vmul.f32 1.0, %v860
      %870 = vrot.lane.b32.xlu0 %v776, 32
      %v871 = vpop.permute.xlu0 %870
      %872 = vrot.lane.b32.xlu0 %v781, 32
      %v873 = vpop.permute.xlu0 %872
      %874 = vrot.lane.b32.xlu0 %v786, 32
      %v875 = vpop.permute.xlu0 %874
      %876 = vrot.lane.b32.xlu0 %v791, 32
      %v877 = vpop.permute.xlu0 %876
      %878 = vrot.lane.b32.xlu0 %v796, 32
      %v879 = vpop.permute.xlu0 %878
      %880 = vrot.lane.b32.xlu0 %v801, 32
      %v881 = vpop.permute.xlu0 %880
      %882 = vrot.lane.b32.xlu0 %v806, 32
      %v883 = vpop.permute.xlu0 %882
      %884 = vrot.lane.b32.xlu0 %v811, 32
      %v885 = vpop.permute.xlu0 %884
      %v894 = vmul.f32 %v847, %v871
      %v895 = vmul.f32 %v849, %v873
      %v896 = vmul.f32 %v851, %v875
      %v897 = vmul.f32 %v853, %v877
      %v898 = vmul.f32 %v855, %v879
      %v899 = vmul.f32 %v857, %v881
      %v900 = vmul.f32 %v859, %v883
      %v901 = vmul.f32 %v861, %v885
      %910 = vrot.lane.b32.xlu0 %v894, 64
      %v911 = vpop.permute.xlu0 %910
      %912 = vrot.lane.b32.xlu0 %v895, 64
      %v913 = vpop.permute.xlu0 %912
      %914 = vrot.lane.b32.xlu0 %v896, 64
      %v915 = vpop.permute.xlu0 %914
      %916 = vrot.lane.b32.xlu0 %v897, 64
      %v917 = vpop.permute.xlu0 %916
      %918 = vrot.lane.b32.xlu0 %v898, 64
      %v919 = vpop.permute.xlu0 %918
      %920 = vrot.lane.b32.xlu0 %v899, 64
      %v921 = vpop.permute.xlu0 %920
      %922 = vrot.lane.b32.xlu0 %v900, 64
      %v923 = vpop.permute.xlu0 %922
      %924 = vrot.lane.b32.xlu0 %v901, 64
      %v925 = vpop.permute.xlu0 %924
      %v934 = vadd.f32 %v776, %v911
      %v935 = vadd.f32 %v781, %v913
      %v936 = vadd.f32 %v786, %v915
      %v937 = vadd.f32 %v791, %v917
      %v938 = vadd.f32 %v796, %v919
      %v939 = vadd.f32 %v801, %v921
      %v940 = vadd.f32 %v806, %v923
      %v941 = vadd.f32 %v811, %v925
      %v942 = vtanh.pop %v934
      %v943 = vtanh.pop %v935
      %v944 = vtanh.pop %v936
      %v945 = vtanh.pop %v937
      %v946 = vtanh.pop %v938
      %v947 = vtanh.pop %v939
      %v948 = vtanh.pop %v940
      %v949 = vtanh.pop %v941
      %v950 = vsub.f32 1.0, %v847
      %v951 = vsub.f32 1.0, %v849
      %v952 = vsub.f32 1.0, %v851
      %v953 = vsub.f32 1.0, %v853
      %v954 = vsub.f32 1.0, %v855
      %v955 = vsub.f32 1.0, %v857
      %v956 = vsub.f32 1.0, %v859
      %v957 = vsub.f32 1.0, %v861
      %966 = vrot.lane.b32.xlu0 %v942, 96
      %v967 = vpop.permute.xlu0 %966
      %968 = vrot.lane.b32.xlu0 %v943, 96
      %v969 = vpop.permute.xlu0 %968
      %970 = vrot.lane.b32.xlu0 %v944, 96
      %v971 = vpop.permute.xlu0 %970
      %972 = vrot.lane.b32.xlu0 %v945, 96
      %v973 = vpop.permute.xlu0 %972
      %974 = vrot.lane.b32.xlu0 %v946, 96
      %v975 = vpop.permute.xlu0 %974
      %976 = vrot.lane.b32.xlu0 %v947, 96
      %v977 = vpop.permute.xlu0 %976
      %978 = vrot.lane.b32.xlu0 %v948, 96
      %v979 = vpop.permute.xlu0 %978
      %980 = vrot.lane.b32.xlu0 %v949, 96
      %v981 = vpop.permute.xlu0 %980
      %v990 = vmul.f32 %v950, %v967
      %v991 = vmul.f32 %v951, %v969
      %v992 = vmul.f32 %v952, %v971
      %v993 = vmul.f32 %v953, %v973
      %v994 = vmul.f32 %v954, %v975
      %v995 = vmul.f32 %v955, %v977
      %v996 = vmul.f32 %v956, %v979
      %v997 = vmul.f32 %v957, %v981
      %v998 = vmul.f32 %v847, %v641
      %v999 = vmul.f32 %v849, %v643
      %v1000 = vmul.f32 %v851, %v645
      %v1001 = vmul.f32 %v853, %v647
      %v1002 = vmul.f32 %v855, %v649
      %v1003 = vmul.f32 %v857, %v651
      %v1004 = vmul.f32 %v859, %v653
      %v1005 = vmul.f32 %v861, %v655
      %v1006 = vadd.f32 %v990, %v998
      %v1007 = vadd.f32 %v991, %v999
      %v1008 = vadd.f32 %v992, %v1000
      %v1009 = vadd.f32 %v993, %v1001
      %v1010 = vadd.f32 %v994, %v1002
      %v1011 = vadd.f32 %v995, %v1003
      %v1012 = vadd.f32 %v996, %v1004
      %v1013 = vadd.f32 %v997, %v1005
      %v1014 = vld [vmem:[%s4] sm:$0xff]
      %v1015 = vld [vmem:[%s4 + $0x8] sm:$0xff]
      %v1016 = vld [vmem:[%s4 + $0x10] sm:$0xff]
      %v1017 = vld [vmem:[%s4 + $0x18] sm:$0xff]
      %1026 = vrot.lane.b32.xlu0 %v1006, 96
      %v1027 = vpop.permute.xlu0 %1026
      %1028 = vrot.lane.b32.xlu0 %v1007, 96
      %v1029 = vpop.permute.xlu0 %1028
      %1030 = vrot.lane.b32.xlu0 %v1008, 96
      %v1031 = vpop.permute.xlu0 %1030
      %1032 = vrot.lane.b32.xlu0 %v1009, 96
      %v1033 = vpop.permute.xlu0 %1032
      %1034 = vrot.lane.b32.xlu0 %v1010, 96
      %v1035 = vpop.permute.xlu0 %1034
      %1036 = vrot.lane.b32.xlu0 %v1011, 96
      %v1037 = vpop.permute.xlu0 %1036
      %1038 = vrot.lane.b32.xlu0 %v1012, 96
      %v1039 = vpop.permute.xlu0 %1038
      %1040 = vrot.lane.b32.xlu0 %v1013, 96
      %v1041 = vpop.permute.xlu0 %1040
      %1042 = vrot.lane.b32.xlu0 %v323, 64
      %v1043 = vpop.permute.xlu0 %1042
      %v1045 = vsel %vm486, %v1027, 0
      %v1047 = vsel %vm486, %v1029, 0
      %v1049 = vsel %vm486, %v1031, 0
      %v1051 = vsel %vm486, %v1033, 0
      %v1053 = vsel %vm486, %v1035, 0
      %v1055 = vsel %vm486, %v1037, 0
      %v1057 = vsel %vm486, %v1039, 0
      %v1059 = vsel %vm486, %v1041, 0
      %1061 = vmatprep.subr.mxu0 0.0
      %1062 = vmatpush1.msra.mxu0 %v1014
      %1063 = vmatprep.subr.mxu0 0.0
      %1064 = vmatpush1.msra.mxu0 %v1015
      %1065 = vmatprep.subr.mxu0 0.0
      %1066 = vmatpush1.msra.mxu0 %v1016
      %1067 = vmatprep.subr.mxu0 0.0
      %1068 = vmatpush1.msra.mxu0 %v1017
      %1069 = vmatprep.subr.mxu0 0.0
      %1070 = vmatpush1.msra.mxu0 0.0
      %1071 = vmatprep.subr.mxu0 0.0
      %1072 = vmatpush1.msra.mxu0 0.0
      %1073 = vmatprep.subr.mxu0 0.0
      %1074 = vmatpush1.msra.mxu0 0.0
      %1075 = vmatprep.subr.mxu0 0.0
      %1076 = vmatpush1.msra.mxu0 0.0
      %1077 = vmatprep.subr.mxu0 0.0
      %1078 = vmatpush1.msra.mxu0 0.0
      %1079 = vmatprep.subr.mxu0 0.0
      %1080 = vmatpush1.msra.mxu0 0.0
      %1081 = vmatprep.subr.mxu0 0.0
      %1082 = vmatpush1.msra.mxu0 0.0
      %1083 = vmatprep.subr.mxu0 0.0
      %1084 = vmatpush1.msra.mxu0 0.0
      %1085 = vmatprep.subr.mxu0 0.0
      %1086 = vmatpush1.msra.mxu0 0.0
      %1087 = vmatprep.subr.mxu0 0.0
      %1088 = vmatpush1.msra.mxu0 0.0
      %1089 = vmatprep.subr.mxu0 0.0
      %1090 = vmatpush1.msra.mxu0 0.0
      %1091 = vmatprep.subr.mxu0 0.0
      %1092 = vmatpush1.msra.mxu0 0.0
      %1093 = vmatprep.subr.mxu0 0.0
      %1094 = vmatpush1.msra.mxu0 0.0
      %1095 = vmatprep.subr.mxu0 0.0
      %1096 = vmatpush1.msra.mxu0 0.0
      %1097 = vmatprep.subr.mxu0 0.0
      %1098 = vmatpush1.msra.mxu0 0.0
      %1099 = vmatprep.subr.mxu0 0.0
      %1100 = vmatpush1.msra.mxu0 0.0
      %1101 = vmatprep.subr.mxu0 0.0
      %1102 = vmatpush1.msra.mxu0 0.0
      %1103 = vmatprep.subr.mxu0 0.0
      %1104 = vmatpush1.msra.mxu0 0.0
      %1105 = vmatprep.subr.mxu0 0.0
      %1106 = vmatpush1.msra.mxu0 0.0
      %1107 = vmatprep.subr.mxu0 0.0
      %1108 = vmatpush1.msra.mxu0 0.0
      %1109 = vmatprep.subr.mxu0 0.0
      %1110 = vmatpush1.msra.mxu0 0.0
      %1111 = vmatprep.subr.mxu0 0.0
      %1112 = vmatpush1.msra.mxu0 0.0
      %1113 = vmatprep.subr.mxu0 0.0
      %1114 = vmatpush1.msra.mxu0 0.0
      %1115 = vmatprep.subr.mxu0 0.0
      %1116 = vmatpush1.msra.mxu0 0.0
      %1117 = vmatprep.subr.mxu0 0.0
      %1118 = vmatpush1.msra.mxu0 0.0
      %1119 = vmatprep.subr.mxu0 0.0
      %1120 = vmatpush1.msra.mxu0 0.0
      %1121 = vmatprep.subr.mxu0 0.0
      %1122 = vmatpush1.msra.mxu0 0.0
      %1123 = vmatprep.subr.mxu0 0.0
      %1124 = vmatpush1.msra.mxu0 0.0
      %1125 = vmatprep.mubr.f32.mxu0 0.0
      %1126 = vmatmul.mubr.f32.gmra.mrb[0].mxu0 %v1045
      %v1127 = vpop.f32.mrb[0].mxu0
      %v1128 = vadd.f32 %v1043, %v1127
      %v1129 = vpop.f32.mrb[0].mxu0
      %1130 = vmatprep.mubr.f32.mxu0 0.0
      %1131 = vmatmul.mubr.f32.gmra.mrb[0].mxu0 %v1047
      %v1132 = vpop.f32.mrb[0].mxu0
      %v1133 = vadd.f32 %v1043, %v1132
      %v1134 = vpop.f32.mrb[0].mxu0
      %1135 = vmatprep.mubr.f32.mxu0 0.0
      %1136 = vmatmul.mubr.f32.gmra.mrb[0].mxu0 %v1049
      %v1137 = vpop.f32.mrb[0].mxu0
      %v1138 = vadd.f32 %v1043, %v1137
      %v1139 = vpop.f32.mrb[0].mxu0
      %1140 = vmatprep.mubr.f32.mxu0 0.0
      %1141 = vmatmul.mubr.f32.gmra.mrb[0].mxu0 %v1051
      %v1142 = vpop.f32.mrb[0].mxu0
      %v1143 = vadd.f32 %v1043, %v1142
      %v1144 = vpop.f32.mrb[0].mxu0
      %1145 = vmatprep.mubr.f32.mxu0 0.0
      %1146 = vmatmul.mubr.f32.gmra.mrb[0].mxu0 %v1053
      %v1147 = vpop.f32.mrb[0].mxu0
      %v1148 = vadd.f32 %v1043, %v1147
      %v1149 = vpop.f32.mrb[0].mxu0
      %1150 = vmatprep.mubr.f32.mxu0 0.0
      %1151 = vmatmul.mubr.f32.gmra.mrb[0].mxu0 %v1055
      %v1152 = vpop.f32.mrb[0].mxu0
      %v1153 = vadd.f32 %v1043, %v1152
      %v1154 = vpop.f32.mrb[0].mxu0
      %1155 = vmatprep.mubr.f32.mxu0 0.0
      %1156 = vmatmul.mubr.f32.gmra.mrb[0].mxu0 %v1057
      %v1157 = vpop.f32.mrb[0].mxu0
      %v1158 = vadd.f32 %v1043, %v1157
      %v1159 = vpop.f32.mrb[0].mxu0
      %1160 = vmatprep.mubr.f32.mxu0 0.0
      %1161 = vmatmul.mubr.f32.gmra.mrb[0].mxu0 %v1059
      %v1162 = vpop.f32.mrb[0].mxu0
      %v1163 = vadd.f32 %v1043, %v1162
      %v1164 = vpop.f32.mrb[0].mxu0
      %1165 = vdwg.mxu0
      %v1166 = vmul.f32 %v1128, 0.5
      %v1167 = vmul.f32 %v1133, 0.5
      %v1168 = vmul.f32 %v1138, 0.5
      %v1169 = vmul.f32 %v1143, 0.5
      %v1170 = vmul.f32 %v1148, 0.5
      %v1171 = vmul.f32 %v1153, 0.5
      %v1172 = vmul.f32 %v1158, 0.5
      %v1173 = vmul.f32 %v1163, 0.5
      %v1174 = vmul.f32 %v1166, 1.442695
      %v1175 = vpow.pop %v1174
      %v1176 = vmul.f32 %v1167, 1.442695
      %v1177 = vpow.pop %v1176
      %v1178 = vmul.f32 %v1168, 1.442695
      %v1179 = vpow.pop %v1178
      %v1180 = vmul.f32 %v1169, 1.442695
      %v1181 = vpow.pop %v1180
      %v1182 = vmul.f32 %v1170, 1.442695
      %v1183 = vpow.pop %v1182
      %v1184 = vmul.f32 %v1171, 1.442695
      %v1185 = vpow.pop %v1184
      %v1186 = vmul.f32 %v1172, 1.442695
      %v1187 = vpow.pop %v1186
      %v1188 = vmul.f32 %v1173, 1.442695
      %v1189 = vpow.pop %v1188
      %1198 = vrot.lane.b32.xlu0 %v1175, 32
      %v1199 = vpop.permute.xlu0 %1198
      %1200 = vrot.lane.b32.xlu0 %v1177, 32
      %v1201 = vpop.permute.xlu0 %1200
      %1202 = vrot.lane.b32.xlu0 %v1179, 32
      %v1203 = vpop.permute.xlu0 %1202
      %1204 = vrot.lane.b32.xlu0 %v1181, 32
      %v1205 = vpop.permute.xlu0 %1204
      %1206 = vrot.lane.b32.xlu0 %v1183, 32
      %v1207 = vpop.permute.xlu0 %1206
      %1208 = vrot.lane.b32.xlu0 %v1185, 32
      %v1209 = vpop.permute.xlu0 %1208
      %1210 = vrot.lane.b32.xlu0 %v1187, 32
      %v1211 = vpop.permute.xlu0 %1210
      %1212 = vrot.lane.b32.xlu0 %v1189, 32
      %v1213 = vpop.permute.xlu0 %1212
      %v1222 = vmul.f32 %v309, %v1199
      %v1223 = vmul.f32 %v310, %v1201
      %v1224 = vmul.f32 %v311, %v1203
      %v1225 = vmul.f32 %v312, %v1205
      %v1226 = vmul.f32 %v313, %v1207
      %v1227 = vmul.f32 %v314, %v1209
      %v1228 = vmul.f32 %v315, %v1211
      %v1229 = vmul.f32 %v316, %v1213
      %1238 = vrot.lane.b32.xlu0 %v1128, 48
      %v1239 = vpop.permute.xlu0 %1238
      %1240 = vrot.lane.b32.xlu0 %v1133, 48
      %v1241 = vpop.permute.xlu0 %1240
      %1242 = vrot.lane.b32.xlu0 %v1138, 48
      %v1243 = vpop.permute.xlu0 %1242
      %1244 = vrot.lane.b32.xlu0 %v1143, 48
      %v1245 = vpop.permute.xlu0 %1244
      %1246 = vrot.lane.b32.xlu0 %v1148, 48
      %v1247 = vpop.permute.xlu0 %1246
      %1248 = vrot.lane.b32.xlu0 %v1153, 48
      %v1249 = vpop.permute.xlu0 %1248
      %1250 = vrot.lane.b32.xlu0 %v1158, 48
      %v1251 = vpop.permute.xlu0 %1250
      %1252 = vrot.lane.b32.xlu0 %v1163, 48
      %v1253 = vpop.permute.xlu0 %1252
      %v1262 = vadd.f32 %v1222, %v1239
      %v1263 = vadd.f32 %v1223, %v1241
      %v1264 = vadd.f32 %v1224, %v1243
      %v1265 = vadd.f32 %v1225, %v1245
      %v1266 = vadd.f32 %v1226, %v1247
      %v1267 = vadd.f32 %v1227, %v1249
      %v1268 = vadd.f32 %v1228, %v1251
      %v1269 = vadd.f32 %v1229, %v1253
      %v1270 = vld [vmem:[%s5] sm:$0xff]
      %v1271 = vld [vmem:[%s5 + $0x8] sm:$0xff]
      %1280 = vrot.lane.b32.xlu0 %v1262, 80
      %v1281 = vpop.permute.xlu0 %1280
      %1282 = vrot.lane.b32.xlu0 %v1263, 80
      %v1283 = vpop.permute.xlu0 %1282
      %1284 = vrot.lane.b32.xlu0 %v1264, 80
      %v1285 = vpop.permute.xlu0 %1284
      %1286 = vrot.lane.b32.xlu0 %v1265, 80
      %v1287 = vpop.permute.xlu0 %1286
      %1288 = vrot.lane.b32.xlu0 %v1266, 80
      %v1289 = vpop.permute.xlu0 %1288
      %1290 = vrot.lane.b32.xlu0 %v1267, 80
      %v1291 = vpop.permute.xlu0 %1290
      %1292 = vrot.lane.b32.xlu0 %v1268, 80
      %v1293 = vpop.permute.xlu0 %1292
      %1294 = vrot.lane.b32.xlu0 %v1269, 80
      %v1295 = vpop.permute.xlu0 %1294
      %1296 = vrot.lane.b32.xlu0 %v323, 32
      %v1297 = vpop.permute.xlu0 %1296
      %v1299 = vsel %vm324, %v1281, 0
      %v1301 = vsel %vm324, %v1283, 0
      %v1303 = vsel %vm324, %v1285, 0
      %v1305 = vsel %vm324, %v1287, 0
      %v1307 = vsel %vm324, %v1289, 0
      %v1309 = vsel %vm324, %v1291, 0
      %v1311 = vsel %vm324, %v1293, 0
      %v1313 = vsel %vm324, %v1295, 0
      %1315 = vmatprep.subr.mxu0 0.0
      %1316 = vmatpush1.msra.mxu0 %v1270
      %1317 = vmatprep.subr.mxu0 0.0
      %1318 = vmatpush1.msra.mxu0 %v1271
      %1319 = vmatprep.subr.mxu0 0.0
      %1320 = vmatpush1.msra.mxu0 0.0
      %1321 = vmatprep.subr.mxu0 0.0
      %1322 = vmatpush1.msra.mxu0 0.0
      %1323 = vmatprep.subr.mxu0 0.0
      %1324 = vmatpush1.msra.mxu0 0.0
      %1325 = vmatprep.subr.mxu0 0.0
      %1326 = vmatpush1.msra.mxu0 0.0
      %1327 = vmatprep.subr.mxu0 0.0
      %1328 = vmatpush1.msra.mxu0 0.0
      %1329 = vmatprep.subr.mxu0 0.0
      %1330 = vmatpush1.msra.mxu0 0.0
      %1331 = vmatprep.subr.mxu0 0.0
      %1332 = vmatpush1.msra.mxu0 0.0
      %1333 = vmatprep.subr.mxu0 0.0
      %1334 = vmatpush1.msra.mxu0 0.0
      %1335 = vmatprep.subr.mxu0 0.0
      %1336 = vmatpush1.msra.mxu0 0.0
      %1337 = vmatprep.subr.mxu0 0.0
      %1338 = vmatpush1.msra.mxu0 0.0
      %1339 = vmatprep.subr.mxu0 0.0
      %1340 = vmatpush1.msra.mxu0 0.0
      %1341 = vmatprep.subr.mxu0 0.0
      %1342 = vmatpush1.msra.mxu0 0.0
      %1343 = vmatprep.subr.mxu0 0.0
      %1344 = vmatpush1.msra.mxu0 0.0
      %1345 = vmatprep.subr.mxu0 0.0
      %1346 = vmatpush1.msra.mxu0 0.0
      %1347 = vmatprep.subr.mxu0 0.0
      %1348 = vmatpush1.msra.mxu0 0.0
      %1349 = vmatprep.subr.mxu0 0.0
      %1350 = vmatpush1.msra.mxu0 0.0
      %1351 = vmatprep.subr.mxu0 0.0
      %1352 = vmatpush1.msra.mxu0 0.0
      %1353 = vmatprep.subr.mxu0 0.0
      %1354 = vmatpush1.msra.mxu0 0.0
      %1355 = vmatprep.subr.mxu0 0.0
      %1356 = vmatpush1.msra.mxu0 0.0
      %1357 = vmatprep.subr.mxu0 0.0
      %1358 = vmatpush1.msra.mxu0 0.0
      %1359 = vmatprep.subr.mxu0 0.0
      %1360 = vmatpush1.msra.mxu0 0.0
      %1361 = vmatprep.subr.mxu0 0.0
      %1362 = vmatpush1.msra.mxu0 0.0
      %1363 = vmatprep.subr.mxu0 0.0
      %1364 = vmatpush1.msra.mxu0 0.0
      %1365 = vmatprep.subr.mxu0 0.0
      %1366 = vmatpush1.msra.mxu0 0.0
      %1367 = vmatprep.subr.mxu0 0.0
      %1368 = vmatpush1.msra.mxu0 0.0
      %1369 = vmatprep.subr.mxu0 0.0
      %1370 = vmatpush1.msra.mxu0 0.0
      %1371 = vmatprep.subr.mxu0 0.0
      %1372 = vmatpush1.msra.mxu0 0.0
      %1373 = vmatprep.subr.mxu0 0.0
      %1374 = vmatpush1.msra.mxu0 0.0
      %1375 = vmatprep.subr.mxu0 0.0
      %1376 = vmatpush1.msra.mxu0 0.0
      %1377 = vmatprep.subr.mxu0 0.0
      %1378 = vmatpush1.msra.mxu0 0.0
      %1379 = vmatprep.mubr.f32.mxu0 0.0
      %1380 = vmatmul.mubr.f32.gmra.mrb[0].mxu0 %v1299
      %v1381 = vpop.f32.mrb[0].mxu0
      %v1382 = vadd.f32 %v1297, %v1381
      %v1383 = vpop.f32.mrb[0].mxu0
      %1384 = vmatprep.mubr.f32.mxu0 0.0
      %1385 = vmatmul.mubr.f32.gmra.mrb[0].mxu0 %v1301
      %v1386 = vpop.f32.mrb[0].mxu0
      %v1387 = vadd.f32 %v1297, %v1386
      %v1388 = vpop.f32.mrb[0].mxu0
      %1389 = vmatprep.mubr.f32.mxu0 0.0
      %1390 = vmatmul.mubr.f32.gmra.mrb[0].mxu0 %v1303
      %v1391 = vpop.f32.mrb[0].mxu0
      %v1392 = vadd.f32 %v1297, %v1391
      %v1393 = vpop.f32.mrb[0].mxu0
      %1394 = vmatprep.mubr.f32.mxu0 0.0
      %1395 = vmatmul.mubr.f32.gmra.mrb[0].mxu0 %v1305
      %v1396 = vpop.f32.mrb[0].mxu0
      %v1397 = vadd.f32 %v1297, %v1396
      %v1398 = vpop.f32.mrb[0].mxu0
      %1399 = vmatprep.mubr.f32.mxu0 0.0
      %1400 = vmatmul.mubr.f32.gmra.mrb[0].mxu0 %v1307
      %v1401 = vpop.f32.mrb[0].mxu0
      %v1402 = vadd.f32 %v1297, %v1401
      %v1403 = vpop.f32.mrb[0].mxu0
      %1404 = vmatprep.mubr.f32.mxu0 0.0
      %1405 = vmatmul.mubr.f32.gmra.mrb[0].mxu0 %v1309
      %v1406 = vpop.f32.mrb[0].mxu0
      %v1407 = vadd.f32 %v1297, %v1406
      %v1408 = vpop.f32.mrb[0].mxu0
      %1409 = vmatprep.mubr.f32.mxu0 0.0
      %1410 = vmatmul.mubr.f32.gmra.mrb[0].mxu0 %v1311
      %v1411 = vpop.f32.mrb[0].mxu0
      %v1412 = vadd.f32 %v1297, %v1411
      %v1413 = vpop.f32.mrb[0].mxu0
      %1414 = vmatprep.mubr.f32.mxu0 0.0
      %1415 = vmatmul.mubr.f32.gmra.mrb[0].mxu0 %v1313
      %v1416 = vpop.f32.mrb[0].mxu0
      %v1417 = vadd.f32 %v1297, %v1416
      %v1418 = vpop.f32.mrb[0].mxu0
      %1419 = vdwg.mxu0
      %vm1420 = vcmp.ge.f32.partialorder %v1382, 0.0
      %vm1421 = vcmp.ge.f32.partialorder %v1387, 0.0
      %vm1422 = vcmp.ge.f32.partialorder %v1392, 0.0
      %vm1423 = vcmp.ge.f32.partialorder %v1397, 0.0
      %vm1424 = vcmp.ge.f32.partialorder %v1402, 0.0
      %vm1425 = vcmp.ge.f32.partialorder %v1407, 0.0
      %vm1426 = vcmp.ge.f32.partialorder %v1412, 0.0
      %vm1427 = vcmp.ge.f32.partialorder %v1417, 0.0
      %v1428 = vmul.f32 %v1382, 0.01
      %v1429 = vmul.f32 %v1387, 0.01
      %v1430 = vmul.f32 %v1392, 0.01
      %v1431 = vmul.f32 %v1397, 0.01
      %v1432 = vmul.f32 %v1402, 0.01
      %v1433 = vmul.f32 %v1407, 0.01
      %v1434 = vmul.f32 %v1412, 0.01
      %v1435 = vmul.f32 %v1417, 0.01
      %v1436 = vsel %vm1420, %v1382, %v1428
      %v1437 = vsel %vm1421, %v1387, %v1429
      %v1438 = vsel %vm1422, %v1392, %v1430
      %v1439 = vsel %vm1423, %v1397, %v1431
      %v1440 = vsel %vm1424, %v1402, %v1432
      %v1441 = vsel %vm1425, %v1407, %v1433
      %v1442 = vsel %vm1426, %v1412, %v1434
      %v1443 = vsel %vm1427, %v1417, %v1435
      %v1444 = vld [vmem:[%s6] sm:$0xff]
      %v1445 = vld [vmem:[%s6 + $0x8] sm:$0xff]
      %v1446 = vld [vmem:[%s6 + $0x10] sm:$0xff]
      %v1447 = vld [vmem:[%s6 + $0x18] sm:$0xff]
      %v1448 = vlaneseq
      %v1449 = vshrl.u32 %v1448, 7
      %v1450 = vsub.s32 2, %v1449
      %v1451 = vrot.slane %v317, %v1450
      %v1453 = vsel %vm486, %v1436, 0
      %v1456 = vsel %vm486, %v1437, 0
      %v1459 = vsel %vm486, %v1438, 0
      %v1462 = vsel %vm486, %v1439, 0
      %v1465 = vsel %vm486, %v1440, 0
      %v1468 = vsel %vm486, %v1441, 0
      %v1471 = vsel %vm486, %v1442, 0
      %v1474 = vsel %vm486, %v1443, 0
      %1476 = vmatprep.subr.mxu0 0.0
      %1477 = vmatpush1.msra.mxu0 %v1444
      %1478 = vmatprep.subr.mxu0 0.0
      %1479 = vmatpush1.msra.mxu0 %v1445
      %1480 = vmatprep.subr.mxu0 0.0
      %1481 = vmatpush1.msra.mxu0 %v1446
      %1482 = vmatprep.subr.mxu0 0.0
      %1483 = vmatpush1.msra.mxu0 %v1447
      %1484 = vmatprep.subr.mxu0 0.0
      %1485 = vmatpush1.msra.mxu0 0.0
      %1486 = vmatprep.subr.mxu0 0.0
      %1487 = vmatpush1.msra.mxu0 0.0
      %1488 = vmatprep.subr.mxu0 0.0
      %1489 = vmatpush1.msra.mxu0 0.0
      %1490 = vmatprep.subr.mxu0 0.0
      %1491 = vmatpush1.msra.mxu0 0.0
      %1492 = vmatprep.subr.mxu0 0.0
      %1493 = vmatpush1.msra.mxu0 0.0
      %1494 = vmatprep.subr.mxu0 0.0
      %1495 = vmatpush1.msra.mxu0 0.0
      %1496 = vmatprep.subr.mxu0 0.0
      %1497 = vmatpush1.msra.mxu0 0.0
      %1498 = vmatprep.subr.mxu0 0.0
      %1499 = vmatpush1.msra.mxu0 0.0
      %1500 = vmatprep.subr.mxu0 0.0
      %1501 = vmatpush1.msra.mxu0 0.0
      %1502 = vmatprep.subr.mxu0 0.0
      %1503 = vmatpush1.msra.mxu0 0.0
      %1504 = vmatprep.subr.mxu0 0.0
      %1505 = vmatpush1.msra.mxu0 0.0
      %1506 = vmatprep.subr.mxu0 0.0
      %1507 = vmatpush1.msra.mxu0 0.0
      %1508 = vmatprep.subr.mxu0 0.0
      %1509 = vmatpush1.msra.mxu0 0.0
      %1510 = vmatprep.subr.mxu0 0.0
      %1511 = vmatpush1.msra.mxu0 0.0
      %1512 = vmatprep.subr.mxu0 0.0
      %1513 = vmatpush1.msra.mxu0 0.0
      %1514 = vmatprep.subr.mxu0 0.0
      %1515 = vmatpush1.msra.mxu0 0.0
      %1516 = vmatprep.subr.mxu0 0.0
      %1517 = vmatpush1.msra.mxu0 0.0
      %1518 = vmatprep.subr.mxu0 0.0
      %1519 = vmatpush1.msra.mxu0 0.0
      %1520 = vmatprep.subr.mxu0 0.0
      %1521 = vmatpush1.msra.mxu0 0.0
      %1522 = vmatprep.subr.mxu0 0.0
      %1523 = vmatpush1.msra.mxu0 0.0
      %1524 = vmatprep.subr.mxu0 0.0
      %1525 = vmatpush1.msra.mxu0 0.0
      %1526 = vmatprep.subr.mxu0 0.0
      %1527 = vmatpush1.msra.mxu0 0.0
      %1528 = vmatprep.subr.mxu0 0.0
      %1529 = vmatpush1.msra.mxu0 0.0
      %1530 = vmatprep.subr.mxu0 0.0
      %1531 = vmatpush1.msra.mxu0 0.0
      %1532 = vmatprep.subr.mxu0 0.0
      %1533 = vmatpush1.msra.mxu0 0.0
      %1534 = vmatprep.subr.mxu0 0.0
      %1535 = vmatpush1.msra.mxu0 0.0
      %1536 = vmatprep.subr.mxu0 0.0
      %1537 = vmatpush1.msra.mxu0 0.0
      %1538 = vmatprep.subr.mxu0 0.0
      %1539 = vmatpush1.msra.mxu0 0.0
      %1540 = vmatprep.mubr.f32.mxu0 0.0
      %1541 = vmatmul.mubr.f32.gmra.mrb[0].mxu0 %v1453
      %v1542 = vpop.f32.mrb[0].mxu0
      %v1543 = vadd.f32 %v1451, %v1542
      %v1544 = vpop.f32.mrb[0].mxu0
      %1545 = vmatprep.mubr.f32.mxu0 0.0
      %1546 = vmatmul.mubr.f32.gmra.mrb[0].mxu0 %v1456
      %v1547 = vpop.f32.mrb[0].mxu0
      %v1548 = vadd.f32 %v1451, %v1547
      %v1549 = vpop.f32.mrb[0].mxu0
      %1550 = vmatprep.mubr.f32.mxu0 0.0
      %1551 = vmatmul.mubr.f32.gmra.mrb[0].mxu0 %v1459
      %v1552 = vpop.f32.mrb[0].mxu0
      %v1553 = vadd.f32 %v1451, %v1552
      %v1554 = vpop.f32.mrb[0].mxu0
      %1555 = vmatprep.mubr.f32.mxu0 0.0
      %1556 = vmatmul.mubr.f32.gmra.mrb[0].mxu0 %v1462
      %v1557 = vpop.f32.mrb[0].mxu0
      %v1558 = vadd.f32 %v1451, %v1557
      %v1559 = vpop.f32.mrb[0].mxu0
      %1560 = vmatprep.mubr.f32.mxu0 0.0
      %1561 = vmatmul.mubr.f32.gmra.mrb[0].mxu0 %v1465
      %v1562 = vpop.f32.mrb[0].mxu0
      %v1563 = vadd.f32 %v1451, %v1562
      %v1564 = vpop.f32.mrb[0].mxu0
      %1565 = vmatprep.mubr.f32.mxu0 0.0
      %1566 = vmatmul.mubr.f32.gmra.mrb[0].mxu0 %v1468
      %v1567 = vpop.f32.mrb[0].mxu0
      %v1568 = vadd.f32 %v1451, %v1567
      %v1569 = vpop.f32.mrb[0].mxu0
      %1570 = vmatprep.mubr.f32.mxu0 0.0
      %1571 = vmatmul.mubr.f32.gmra.mrb[0].mxu0 %v1471
      %v1572 = vpop.f32.mrb[0].mxu0
      %v1573 = vadd.f32 %v1451, %v1572
      %v1574 = vpop.f32.mrb[0].mxu0
      %1575 = vmatprep.mubr.f32.mxu0 0.0
      %1576 = vmatmul.mubr.f32.gmra.mrb[0].mxu0 %v1474
      %v1577 = vpop.f32.mrb[0].mxu0
      %v1578 = vadd.f32 %v1451, %v1577
      %v1579 = vpop.f32.mrb[0].mxu0
      %1580 = vdwg.mxu0
      %1581 = vrot.lane.b32.xlu0 %v1128, 16
      %v1582 = vpop.permute.xlu0 %1581
      %1583 = vrot.lane.b32.xlu0 %v1133, 16
      %v1584 = vpop.permute.xlu0 %1583
      %1585 = vrot.lane.b32.xlu0 %v1138, 16
      %v1586 = vpop.permute.xlu0 %1585
      %1587 = vrot.lane.b32.xlu0 %v1143, 16
      %v1588 = vpop.permute.xlu0 %1587
      %1589 = vrot.lane.b32.xlu0 %v1148, 16
      %v1590 = vpop.permute.xlu0 %1589
      %1591 = vrot.lane.b32.xlu0 %v1153, 16
      %v1592 = vpop.permute.xlu0 %1591
      %1593 = vrot.lane.b32.xlu0 %v1158, 16
      %v1594 = vpop.permute.xlu0 %1593
      %1595 = vrot.lane.b32.xlu0 %v1163, 16
      %v1596 = vpop.permute.xlu0 %1595
      %1605 = vrot.lane.b32.xlu0 %v1006, 16
      %v1606 = vpop.permute.xlu0 %1605
      %1607 = vrot.lane.b32.xlu0 %v1007, 16
      %v1608 = vpop.permute.xlu0 %1607
      %1609 = vrot.lane.b32.xlu0 %v1008, 16
      %v1610 = vpop.permute.xlu0 %1609
      %1611 = vrot.lane.b32.xlu0 %v1009, 16
      %v1612 = vpop.permute.xlu0 %1611
      %1613 = vrot.lane.b32.xlu0 %v1010, 16
      %v1614 = vpop.permute.xlu0 %1613
      %1615 = vrot.lane.b32.xlu0 %v1011, 16
      %v1616 = vpop.permute.xlu0 %1615
      %1617 = vrot.lane.b32.xlu0 %v1012, 16
      %v1618 = vpop.permute.xlu0 %1617
      %1619 = vrot.lane.b32.xlu0 %v1013, 16
      %v1620 = vpop.permute.xlu0 %1619
      %v1629 = vsel %vm324, %v1543, %v1582
      %v1630 = vsel %vm324, %v1548, %v1584
      %v1631 = vsel %vm324, %v1553, %v1586
      %v1632 = vsel %vm324, %v1558, %v1588
      %v1633 = vsel %vm324, %v1563, %v1590
      %v1634 = vsel %vm324, %v1568, %v1592
      %v1635 = vsel %vm324, %v1573, %v1594
      %v1636 = vsel %vm324, %v1578, %v1596
      %v1637 = vsel %vm486, %v1629, %v1582
      %v1638 = vsel %vm486, %v1630, %v1584
      %v1639 = vsel %vm486, %v1631, %v1586
      %v1640 = vsel %vm486, %v1632, %v1588
      %v1641 = vsel %vm486, %v1633, %v1590
      %v1642 = vsel %vm486, %v1634, %v1592
      %v1643 = vsel %vm486, %v1635, %v1594
      %v1644 = vsel %vm486, %v1636, %v1596
      %vm1645 = vcmask 392192
      %v1646 = vsel %vm1645, %v1637, %v1606
      %v1647 = vsel %vm1645, %v1638, %v1608
      %v1648 = vsel %vm1645, %v1639, %v1610
      %v1649 = vsel %vm1645, %v1640, %v1612
      %v1650 = vsel %vm1645, %v1641, %v1614
      %v1651 = vsel %vm1645, %v1642, %v1616
      %v1652 = vsel %vm1645, %v1643, %v1618
      %v1653 = vsel %vm1645, %v1644, %v1620
      %vm1654 = vcmask 654336
      %v1655 = vsel %vm1654, %v1646, 0.0
      %v1656 = vsel %vm1654, %v1647, 0.0
      %v1657 = vsel %vm1654, %v1648, 0.0
      %v1658 = vsel %vm1654, %v1649, 0.0
      %v1659 = vsel %vm1654, %v1650, 0.0
      %v1660 = vsel %vm1654, %v1651, 0.0
      %v1661 = vsel %vm1654, %v1652, 0.0
      %v1662 = vsel %vm1654, %v1653, 0.0
      %1663 = vst [vmem:[%s307] sm:$0xff] %v1655
      %1664 = vst [vmem:[%s307 + $0x8] sm:$0xff] %v1656
      %1665 = vst [vmem:[%s307 + $0x10] sm:$0xff] %v1657
      %1666 = vst [vmem:[%s307 + $0x18] sm:$0xff] %v1658
      %1667 = vst [vmem:[%s307 + $0x20] sm:$0xff] %v1659
      %1668 = vst [vmem:[%s307 + $0x28] sm:$0xff] %v1660
      %1669 = vst [vmem:[%s307 + $0x30] sm:$0xff] %v1661
      %1670 = vst [vmem:[%s307 + $0x38] sm:$0xff] %v1662
      %s1671 = smul.u32 8, %s19
      %p1672 = scmp.lt.s32.totalorder %s1671, 31
      %s1673 = scalar_select %p1672, %s1671, 31
      %s1674 = smul.addr %s1673, 8
      %s1675 = scalar_lea.vmem %s8, %s1674
      // Predicated region
      $region53: #{ob_vae_forward.1} parent=51 // pred_check
        %p1676 = pneg %p210
      $region54: #{ob_vae_forward.1} parent=51 // pred_check_branch
        %1678 = sbr.rel (%p1676) target = $region56
      $region55: #{ob_vae_forward.1} parent=51 // pred_region
        %s1679 = smul.u32 8, %s19
      $region56: #{ob_vae_forward.1} parent=51 // pred_fallthru
        _
    $region52: #{ob_vae_forward.1} parent=5 // pred_fallthru
      _
    %p1680 = scmp.le.s32.totalorder 2, %s14
    // Predicated region
    $region57: #{ob_vae_forward.1} parent=5 // pred_check
      %p1681 = pneg %p1680
    $region58: #{ob_vae_forward.1} parent=5 // pred_check_branch
      %1683 = sbr.rel (%p1681) target = $region60
    $region59: #{ob_vae_forward.1} parent=5 // pred_region
      %s1684 = ssub.s32 %s14, 2
      // Predicated region
      $region61: #{ob_vae_forward.1} parent=59 // pred_check
        %p1685 = pneg %p216
      $region62: #{ob_vae_forward.1} parent=59 // pred_check_branch
        %1687 = sbr.rel (%p1685) target = $region64
      $region63: #{ob_vae_forward.1} parent=59 // pred_region
        %s1688 = smul.u32 8, %s20
        %p1689 = scmp.lt.s32.totalorder %s1688, 31
        %s1690 = scalar_select %p1689, %s1688, 31
        %s1691 = smul.addr %s1690, 8
        %s1692 = scalar_lea.vmem %s8, %s1691
      $region64: #{ob_vae_forward.1} parent=59 // pred_fallthru
        _
    $region60: #{ob_vae_forward.1} parent=5 // pred_fallthru
      _
  $region6: #{ob_vae_forward.1} parent=0 // loop_footer
    %s18 = sadd.s32 1, %s14
  $region7: #{ob_vae_forward.1} parent=0 // loop_footer_branch
    %13 = sbr.rel target = $region3
  $region8: #{ob_vae_forward.1} parent=0 // loop_exit
    _

</llo_original>
